<compile_context>
chip_gen: v7x
topology: tpu7x:2x2x1
jax: 0.10.0
libtpu: 0.0.40
codegen_flags: <defaults>
</compile_context>

<pallas_src>
import math
import functools

import jax
import jax.numpy as jnp
from jax.experimental import pallas as pl
from jax.experimental.pallas import tpu as pltpu


# Packed small-parameter row layout.  Rows 5..7 are zero padding so the mask
# blocks start on sublane-tile (8-row) boundaries.
ROW_BO, ROW_G1, ROW_B1, ROW_G2, ROW_B2 = 0, 1, 2, 3, 4
ROW_QMASK = 8          # num_heads rows: one-hot head masks * 1/sqrt(dim_out)
# binary gather masks start at ROW_QMASK + num_heads


def _selfattn_kernel(x_ref, w_ref, p_ref, out_ref,
                     *, batch, seq, num_heads, dim_out):
    f32 = jnp.float32
    B, N, H, D = batch, seq, num_heads, dim_out
    row_gmask = ROW_QMASK + H

    x = x_ref[...]                                            # [B*N, Din]

    # Single weight DMA; leading-dim indexing is relayout-free.
    wq = w_ref[0]
    wk = w_ref[1]
    wv = w_ref[2]
    wo = w_ref[3]

    q = jnp.dot(x, wq, preferred_element_type=f32)            # [B*N, D]
    k = jnp.dot(x, wk, preferred_element_type=f32)
    v = jnp.dot(x, wv, preferred_element_type=f32)

    # Layout-preserving reshapes (split B*N sublanes into a leading batch dim).
    q3 = q.reshape(B, N, D)
    k3 = k.reshape(B, N, D)
    v3 = v.reshape(B, N, D)

    qmask = p_ref[ROW_QMASK:ROW_QMASK + H, :]                 # [H, D] pre-scaled
    gmask = p_ref[row_gmask:row_gmask + H, :]                 # [H, D] binary

    # Stacked masked queries along the sublane axis: [B, H, N, D] -> [B, H*N, D].
    # The mask zeroes every other head's columns of q, so the contraction over
    # the full D reduces to the per-head dot product (scale already folded in).
    qm = (q3[:, None, :, :] * qmask[None, :, None, :]).reshape(B, H * N, D)

    # One logits matmul for all heads.
    logits = jnp.einsum('bjd,bmd->bjm', qm, k3,
                        preferred_element_type=f32)           # [B, H*N, N]

    # Single softmax pass for all heads; exact reciprocal (correctness review).
    m = jnp.max(logits, axis=-1, keepdims=True)
    e = jnp.exp(logits - m)
    a = e / jnp.sum(e, axis=-1, keepdims=True)

    # One PV matmul against unmasked v; mask-and-sum over H reconstitutes the
    # per-head column concatenation (disjoint one-hot column masks).
    o = jnp.einsum('bjm,bmd->bjd', a, v3,
                   preferred_element_type=f32)                # [B, H*N, D]
    o4 = o.reshape(B, H, N, D)
    attn = jnp.sum(o4 * gmask[None, :, None, :], axis=1)      # [B, N, D]
    attn2 = attn.reshape(B * N, D)

    bo = p_ref[ROW_BO:ROW_BO + 1, :]
    g1 = p_ref[ROW_G1:ROW_G1 + 1, :]
    b1 = p_ref[ROW_B1:ROW_B1 + 1, :]
    g2 = p_ref[ROW_G2:ROW_G2 + 1, :]
    b2 = p_ref[ROW_B2:ROW_B2 + 1, :]

    # residual + LayerNorm 1  (eps = 1e-5, biased variance)
    h1 = q + attn2
    mu1 = jnp.mean(h1, axis=-1, keepdims=True)
    var1 = jnp.mean((h1 - mu1) ** 2, axis=-1, keepdims=True)
    y1 = (h1 - mu1) * jax.lax.rsqrt(var1 + 1e-5) * g1 + b1

    # fc_out (+bias) + ReLU, residual + LayerNorm 2
    fo = jnp.dot(y1, wo, preferred_element_type=f32) + bo
    h2 = y1 + jnp.maximum(fo, 0.0)
    mu2 = jnp.mean(h2, axis=-1, keepdims=True)
    var2 = jnp.mean((h2 - mu2) ** 2, axis=-1, keepdims=True)
    y2 = (h2 - mu2) * jax.lax.rsqrt(var2 + 1e-5) * g2 + b2

    out_ref[...] = y2.astype(out_ref.dtype)


def self_attn_pallas(x, params, num_heads):
    """x: [B, N, Din] float32.  params: dict of transposed weights / vectors."""
    B, N, Din = x.shape
    Dout = params["wq"].shape[1]
    hd = Dout // num_heads
    BN = B * N

    # Host-side packing (free).
    # Single weight stack (requires dim_in == dim_out, as in this demo).
    wstack = jnp.stack(
        [params["wq"], params["wk"], params["wv"], params["wo"]], axis=0)

    col = jnp.arange(Dout)
    gmask = (col[None, :] // hd ==
             jnp.arange(num_heads)[:, None]).astype(jnp.float32)   # [H, Dout]
    qmask = gmask * (1.0 / math.sqrt(Dout))      # scale folded into q-path mask

    pvec = jnp.concatenate([
        params["bo"], params["g1"], params["b1"], params["g2"], params["b2"],
        jnp.zeros((ROW_QMASK - 5, Dout), jnp.float32),
        qmask, gmask,
    ], axis=0)                                   # [8 + 2H, Dout]
    P = pvec.shape[0]

    xf = x.reshape(BN, Din)

    kernel = functools.partial(_selfattn_kernel, batch=B, seq=N,
                               num_heads=num_heads, dim_out=Dout)

    out2d = pl.pallas_call(
        kernel,
        out_shape=jax.ShapeDtypeStruct((BN, Dout), jnp.float32),
        grid_spec=pltpu.PrefetchScalarGridSpec(
            num_scalar_prefetch=0,
            grid=(1,),
            in_specs=[
                pl.BlockSpec((BN, Din), lambda i: (0, 0)),          # x (flat)
                pl.BlockSpec((4, Din, Dout), lambda i: (0, 0, 0)),  # weight stack
                pl.BlockSpec((P, Dout), lambda i: (0, 0)),          # packed params
            ],
            out_specs=pl.BlockSpec((BN, Dout), lambda i: (0, 0)),
        ),
        compiler_params=pltpu.CompilerParams(
            dimension_semantics=("arbitrary",)),
    )(xf, wstack, pvec)

    return out2d.reshape(B, N, Dout)


def self_attn_ref(x, params, num_heads):
    """Pure-JAX reference mirroring the PyTorch module (mask=None)."""
    Dout = params["wq"].shape[1]
    hd = Dout // num_heads
    q = x @ params["wq"]
    k = x @ params["wk"]
    v = x @ params["wv"]

    def per_head(qh, kh, vh):
        logits = jnp.einsum("bnd,bmd->bnm", qh, kh) / math.sqrt(Dout)
        a = jax.nn.softmax(logits, axis=-1)
        return jnp.einsum("bnm,bmd->bnd", a, vh)

    heads = [per_head(q[..., h * hd:(h + 1) * hd], k[..., h * hd:(h + 1) * hd],
                      v[..., h * hd:(h + 1) * hd]) for h in range(num_heads)]
    attn = jnp.concatenate(heads, axis=-1)

    def ln(z, g, b):
        mu = jnp.mean(z, -1, keepdims=True)
        var = jnp.mean((z - mu) ** 2, -1, keepdims=True)
        return (z - mu) * jax.lax.rsqrt(var + 1e-5) * g + b

    y1 = ln(q + attn, params["g1"][0], params["b1"][0])
    fo = y1 @ params["wo"] + params["bo"][0]
    return ln(y1 + jax.nn.relu(fo), params["g2"][0], params["b2"][0])


if __name__ == "__main__":
    B, N = 2, 8
    dim_in, dim_out, num_heads = 32, 32, 8

    key = jax.random.PRNGKey(0)
    kx, kq, kk, kv, ko, kb = jax.random.split(key, 6)

    x = jax.random.normal(kx, (B, N, dim_in), dtype=jnp.float32)

    # Deterministic synthetic parameters (Linear weights stored transposed: [in, out]).
    s = 1.0 / math.sqrt(dim_in)
    params = {
        "wq": jax.random.uniform(kq, (dim_in, dim_out), jnp.float32, -s, s),
        "wk": jax.random.uniform(kk, (dim_in, dim_out), jnp.float32, -s, s),
        "wv": jax.random.uniform(kv, (dim_in, dim_out), jnp.float32, -s, s),
        "wo": jax.random.uniform(ko, (dim_out, dim_out), jnp.float32, -s, s),
        "bo": jax.random.uniform(kb, (1, dim_out), jnp.float32, -s, s),
        "g1": jnp.ones((1, dim_out), jnp.float32),
        "b1": jnp.zeros((1, dim_out), jnp.float32),
        "g2": jnp.ones((1, dim_out), jnp.float32),
        "b2": jnp.zeros((1, dim_out), jnp.float32),
    }

    out = self_attn_pallas(x, params, num_heads)
    out = jax.block_until_ready(out)

    ref = self_attn_ref(x, params, num_heads)
    assert out.shape == (B, N, dim_out)
    # Exact softmax reciprocal restored -> tight tolerance restored.
    assert jnp.allclose(out, ref, atol=1e-4, rtol=1e-4), \
        f"max err {jnp.max(jnp.abs(out - ref))}"
    print("KERNEL_OK")
</pallas_src>

<mosaic_0001>
module attributes {stable_mosaic.version = 11 : i64} {
  func.func @_selfattn_kernel(%arg0: i32, %arg1: memref<16x32xf32, #tpu.memory_space<vmem>>, %arg2: memref<4x32x32xf32, #tpu.memory_space<vmem>>, %arg3: memref<24x32xf32, #tpu.memory_space<vmem>>, %arg4: memref<16x32xf32, #tpu.memory_space<vmem>>) attributes {dimension_semantics = [#tpu.dimension_semantics<arbitrary>], iteration_bounds = array<i64: 1>, scalar_prefetch = 0 : i64, scratch_operands = 0 : i64, tpu.core_type = #tpu.core_type<tc>, window_params = [{pipeline_mode = #tpu.pipeline_mode<synchronous>, transform_indices = @transform_0, window_bounds = array<i64: 16, 32>}, {pipeline_mode = #tpu.pipeline_mode<synchronous>, transform_indices = @transform_1, window_bounds = array<i64: 4, 32, 32>}, {pipeline_mode = #tpu.pipeline_mode<synchronous>, transform_indices = @transform_2, window_bounds = array<i64: 24, 32>}, {pipeline_mode = #tpu.pipeline_mode<synchronous>, transform_indices = @transform_3, window_bounds = array<i64: 16, 32>}]} {
    %c0 = arith.constant 0 : index
    %c0_0 = arith.constant 0 : index
    %0 = vector.load %arg1[%c0, %c0_0] : memref<16x32xf32, #tpu.memory_space<vmem>>, vector<16x32xf32>
    %c0_1 = arith.constant 0 : index
    %c0_2 = arith.constant 0 : index
    %c0_3 = arith.constant 0 : index
    %1 = vector.load %arg2[%c0_1, %c0_2, %c0_3] : memref<4x32x32xf32, #tpu.memory_space<vmem>>, vector<1x32x32xf32>
    %2 = vector.shape_cast %1 : vector<1x32x32xf32> to vector<32x32xf32>
    %c1 = arith.constant 1 : index
    %c0_4 = arith.constant 0 : index
    %c0_5 = arith.constant 0 : index
    %3 = vector.load %arg2[%c1, %c0_4, %c0_5] : memref<4x32x32xf32, #tpu.memory_space<vmem>>, vector<1x32x32xf32>
    %4 = vector.shape_cast %3 : vector<1x32x32xf32> to vector<32x32xf32>
    %c2 = arith.constant 2 : index
    %c0_6 = arith.constant 0 : index
    %c0_7 = arith.constant 0 : index
    %5 = vector.load %arg2[%c2, %c0_6, %c0_7] : memref<4x32x32xf32, #tpu.memory_space<vmem>>, vector<1x32x32xf32>
    %6 = vector.shape_cast %5 : vector<1x32x32xf32> to vector<32x32xf32>
    %c3 = arith.constant 3 : index
    %c0_8 = arith.constant 0 : index
    %c0_9 = arith.constant 0 : index
    %7 = vector.load %arg2[%c3, %c0_8, %c0_9] : memref<4x32x32xf32, #tpu.memory_space<vmem>>, vector<1x32x32xf32>
    %8 = vector.shape_cast %7 : vector<1x32x32xf32> to vector<32x32xf32>
    %cst = arith.constant dense<0.000000e+00> : vector<16x32xf32>
    %9 = tpu.matmul %0, %2, %cst {dimension_numbers = #tpu.dot_dimension_numbers<[1], [0], [0], [1], [0, 0, 1, 1], [], []>} : vector<16x32xf32>, vector<32x32xf32>, vector<16x32xf32> -> vector<16x32xf32>
    %cst_10 = arith.constant dense<0.000000e+00> : vector<16x32xf32>
    %10 = tpu.matmul %0, %4, %cst_10 {dimension_numbers = #tpu.dot_dimension_numbers<[1], [0], [0], [1], [0, 0, 1, 1], [], []>} : vector<16x32xf32>, vector<32x32xf32>, vector<16x32xf32> -> vector<16x32xf32>
    %cst_11 = arith.constant dense<0.000000e+00> : vector<16x32xf32>
    %11 = tpu.matmul %0, %6, %cst_11 {dimension_numbers = #tpu.dot_dimension_numbers<[1], [0], [0], [1], [0, 0, 1, 1], [], []>} : vector<16x32xf32>, vector<32x32xf32>, vector<16x32xf32> -> vector<16x32xf32>
    %12 = vector.shape_cast %9 : vector<16x32xf32> to vector<2x8x32xf32>
    %13 = vector.shape_cast %10 : vector<16x32xf32> to vector<2x8x32xf32>
    %14 = vector.shape_cast %11 : vector<16x32xf32> to vector<2x8x32xf32>
    %c8 = arith.constant 8 : index
    %c0_12 = arith.constant 0 : index
    %15 = vector.load %arg3[%c8, %c0_12] : memref<24x32xf32, #tpu.memory_space<vmem>>, vector<8x32xf32>
    %c16 = arith.constant 16 : index
    %c0_13 = arith.constant 0 : index
    %16 = vector.load %arg3[%c16, %c0_13] : memref<24x32xf32, #tpu.memory_space<vmem>>, vector<8x32xf32>
    %17 = vector.shape_cast %12 : vector<2x8x32xf32> to vector<2x1x8x32xf32>
    %18 = vector.shape_cast %15 : vector<8x32xf32> to vector<1x8x1x32xf32>
    %19 = vector.broadcast %17 : vector<2x1x8x32xf32> to vector<2x8x8x32xf32>
    %20 = vector.broadcast %18 : vector<1x8x1x32xf32> to vector<2x8x8x32xf32>
    %21 = arith.mulf %19, %20 : vector<2x8x8x32xf32>
    %22 = vector.shape_cast %21 : vector<2x8x8x32xf32> to vector<2x64x32xf32>
    "tpu.trace_start"() <{level = 10 : i32, message = "bjd,bmd->bjm"}> : () -> ()
    %cst_14 = arith.constant dense<0.000000e+00> : vector<2x64x8xf32>
    %23 = tpu.matmul %22, %13, %cst_14 {dimension_numbers = #tpu.dot_dimension_numbers<[2], [2], [1], [1], [0, 0, 0, 1, 1, 1], [0], [0]>} : vector<2x64x32xf32>, vector<2x8x32xf32>, vector<2x64x8xf32> -> vector<2x64x8xf32>
    "tpu.trace_stop"() : () -> ()
    %cst_15 = arith.constant dense<0xFF800000> : vector<2x64xf32>
    %24 = vector.multi_reduction <maximumf>, %23, %cst_15 [2] : vector<2x64x8xf32> to vector<2x64xf32>
    %25 = vector.shape_cast %24 : vector<2x64xf32> to vector<2x64x1xf32>
    %26 = vector.broadcast %25 : vector<2x64x1xf32> to vector<2x64x8xf32>
    %27 = arith.subf %23, %26 : vector<2x64x8xf32>
    %28 = math.exp %27 : vector<2x64x8xf32>
    %cst_16 = arith.constant dense<0.000000e+00> : vector<2x64xf32>
    %29 = vector.multi_reduction <add>, %28, %cst_16 [2] : vector<2x64x8xf32> to vector<2x64xf32>
    %30 = vector.shape_cast %29 : vector<2x64xf32> to vector<2x64x1xf32>
    %31 = vector.broadcast %30 : vector<2x64x1xf32> to vector<2x64x8xf32>
    %32 = arith.divf %28, %31 : vector<2x64x8xf32>
    "tpu.trace_start"() <{level = 10 : i32, message = "bjm,bmd->bjd"}> : () -> ()
    %cst_17 = arith.constant dense<0.000000e+00> : vector<2x64x32xf32>
    %33 = tpu.matmul %32, %14, %cst_17 {dimension_numbers = #tpu.dot_dimension_numbers<[2], [1], [1], [2], [0, 0, 0, 1, 1, 2], [0], [0]>} : vector<2x64x8xf32>, vector<2x8x32xf32>, vector<2x64x32xf32> -> vector<2x64x32xf32>
    "tpu.trace_stop"() : () -> ()
    %34 = vector.shape_cast %33 : vector<2x64x32xf32> to vector<2x8x8x32xf32>
    %35 = vector.shape_cast %16 : vector<8x32xf32> to vector<1x8x1x32xf32>
    %36 = vector.broadcast %35 : vector<1x8x1x32xf32> to vector<2x8x8x32xf32>
    %37 = arith.mulf %34, %36 : vector<2x8x8x32xf32>
    %cst_18 = arith.constant dense<0.000000e+00> : vector<2x8x32xf32>
    %38 = vector.multi_reduction <add>, %37, %cst_18 [1] : vector<2x8x8x32xf32> to vector<2x8x32xf32>
    %39 = vector.shape_cast %38 : vector<2x8x32xf32> to vector<16x32xf32>
    %c0_19 = arith.constant 0 : index
    %c0_20 = arith.constant 0 : index
    %40 = vector.load %arg3[%c0_19, %c0_20] : memref<24x32xf32, #tpu.memory_space<vmem>>, vector<1x32xf32>
    %c1_21 = arith.constant 1 : index
    %c0_22 = arith.constant 0 : index
    %41 = vector.load %arg3[%c1_21, %c0_22] : memref<24x32xf32, #tpu.memory_space<vmem>>, vector<1x32xf32>
    %c2_23 = arith.constant 2 : index
    %c0_24 = arith.constant 0 : index
    %42 = vector.load %arg3[%c2_23, %c0_24] : memref<24x32xf32, #tpu.memory_space<vmem>>, vector<1x32xf32>
    %c3_25 = arith.constant 3 : index
    %c0_26 = arith.constant 0 : index
    %43 = vector.load %arg3[%c3_25, %c0_26] : memref<24x32xf32, #tpu.memory_space<vmem>>, vector<1x32xf32>
    %c4 = arith.constant 4 : index
    %c0_27 = arith.constant 0 : index
    %44 = vector.load %arg3[%c4, %c0_27] : memref<24x32xf32, #tpu.memory_space<vmem>>, vector<1x32xf32>
    %45 = arith.addf %9, %39 : vector<16x32xf32>
    %cst_28 = arith.constant dense<0.000000e+00> : vector<16xf32>
    %46 = vector.multi_reduction <add>, %45, %cst_28 [1] : vector<16x32xf32> to vector<16xf32>
    %47 = vector.shape_cast %46 : vector<16xf32> to vector<16x1xf32>
    %cst_29 = arith.constant 3.200000e+01 : f32
    %48 = vector.broadcast %cst_29 : f32 to vector<16x1xf32>
    %49 = arith.divf %47, %48 : vector<16x1xf32>
    %50 = vector.broadcast %49 : vector<16x1xf32> to vector<16x32xf32>
    %51 = arith.subf %45, %50 : vector<16x32xf32>
    %52 = arith.mulf %51, %51 : vector<16x32xf32>
    %cst_30 = arith.constant dense<0.000000e+00> : vector<16xf32>
    %53 = vector.multi_reduction <add>, %52, %cst_30 [1] : vector<16x32xf32> to vector<16xf32>
    %54 = vector.shape_cast %53 : vector<16xf32> to vector<16x1xf32>
    %cst_31 = arith.constant 3.200000e+01 : f32
    %55 = vector.broadcast %cst_31 : f32 to vector<16x1xf32>
    %56 = arith.divf %54, %55 : vector<16x1xf32>
    %57 = vector.broadcast %49 : vector<16x1xf32> to vector<16x32xf32>
    %58 = arith.subf %45, %57 : vector<16x32xf32>
    %cst_32 = arith.constant 9.99999974E-6 : f32
    %59 = vector.broadcast %cst_32 : f32 to vector<16x1xf32>
    %60 = arith.addf %56, %59 : vector<16x1xf32>
    %61 = math.rsqrt %60 : vector<16x1xf32>
    %62 = vector.broadcast %61 : vector<16x1xf32> to vector<16x32xf32>
    %63 = arith.mulf %58, %62 : vector<16x32xf32>
    %64 = vector.broadcast %41 : vector<1x32xf32> to vector<16x32xf32>
    %65 = arith.mulf %63, %64 : vector<16x32xf32>
    %66 = vector.broadcast %42 : vector<1x32xf32> to vector<16x32xf32>
    %67 = arith.addf %65, %66 : vector<16x32xf32>
    %cst_33 = arith.constant dense<0.000000e+00> : vector<16x32xf32>
    %68 = tpu.matmul %67, %8, %cst_33 {dimension_numbers = #tpu.dot_dimension_numbers<[1], [0], [0], [1], [0, 0, 1, 1], [], []>} : vector<16x32xf32>, vector<32x32xf32>, vector<16x32xf32> -> vector<16x32xf32>
    %69 = vector.broadcast %40 : vector<1x32xf32> to vector<16x32xf32>
    %70 = arith.addf %68, %69 : vector<16x32xf32>
    %cst_34 = arith.constant 0.000000e+00 : f32
    %71 = vector.broadcast %cst_34 : f32 to vector<16x32xf32>
    %72 = arith.maximumf %70, %71 : vector<16x32xf32>
    %73 = arith.addf %67, %72 : vector<16x32xf32>
    %cst_35 = arith.constant dense<0.000000e+00> : vector<16xf32>
    %74 = vector.multi_reduction <add>, %73, %cst_35 [1] : vector<16x32xf32> to vector<16xf32>
    %75 = vector.shape_cast %74 : vector<16xf32> to vector<16x1xf32>
    %cst_36 = arith.constant 3.200000e+01 : f32
    %76 = vector.broadcast %cst_36 : f32 to vector<16x1xf32>
    %77 = arith.divf %75, %76 : vector<16x1xf32>
    %78 = vector.broadcast %77 : vector<16x1xf32> to vector<16x32xf32>
    %79 = arith.subf %73, %78 : vector<16x32xf32>
    %80 = arith.mulf %79, %79 : vector<16x32xf32>
    %cst_37 = arith.constant dense<0.000000e+00> : vector<16xf32>
    %81 = vector.multi_reduction <add>, %80, %cst_37 [1] : vector<16x32xf32> to vector<16xf32>
    %82 = vector.shape_cast %81 : vector<16xf32> to vector<16x1xf32>
    %cst_38 = arith.constant 3.200000e+01 : f32
    %83 = vector.broadcast %cst_38 : f32 to vector<16x1xf32>
    %84 = arith.divf %82, %83 : vector<16x1xf32>
    %85 = vector.broadcast %77 : vector<16x1xf32> to vector<16x32xf32>
    %86 = arith.subf %73, %85 : vector<16x32xf32>
    %cst_39 = arith.constant 9.99999974E-6 : f32
    %87 = vector.broadcast %cst_39 : f32 to vector<16x1xf32>
    %88 = arith.addf %84, %87 : vector<16x1xf32>
    %89 = math.rsqrt %88 : vector<16x1xf32>
    %90 = vector.broadcast %89 : vector<16x1xf32> to vector<16x32xf32>
    %91 = arith.mulf %86, %90 : vector<16x32xf32>
    %92 = vector.broadcast %43 : vector<1x32xf32> to vector<16x32xf32>
    %93 = arith.mulf %91, %92 : vector<16x32xf32>
    %94 = vector.broadcast %44 : vector<1x32xf32> to vector<16x32xf32>
    %95 = arith.addf %93, %94 : vector<16x32xf32>
    %c0_40 = arith.constant 0 : index
    %c0_41 = arith.constant 0 : index
    %96 = vector.load %arg4[%c0_40, %c0_41] : memref<16x32xf32, #tpu.memory_space<vmem>>, vector<16x32xf32>
    tpu.vector_store %arg4[%c0_40, %c0_41], %95 {strides = array<i32>} : memref<16x32xf32, #tpu.memory_space<vmem>>, vector<16x32xf32>,
    return
  }
  func.func @transform_0(%arg0: i32) -> (i32, i32) {
    %c0_i32 = arith.constant 0 : i32
    %c0_i32_0 = arith.constant 0 : i32
    %c0_i32_1 = arith.constant 0 : i32
    return %c0_i32, %c0_i32_0 : i32, i32
  }
  func.func @transform_1(%arg0: i32) -> (i32, i32, i32) {
    %c0_i32 = arith.constant 0 : i32
    %c0_i32_0 = arith.constant 0 : i32
    %c0_i32_1 = arith.constant 0 : i32
    %c0_i32_2 = arith.constant 0 : i32
    return %c0_i32, %c0_i32_0, %c0_i32_1 : i32, i32, i32
  }
  func.func @transform_2(%arg0: i32) -> (i32, i32) {
    %c0_i32 = arith.constant 0 : i32
    %c0_i32_0 = arith.constant 0 : i32
    %c0_i32_1 = arith.constant 0 : i32
    return %c0_i32, %c0_i32_0 : i32, i32
  }
  func.func @transform_3(%arg0: i32) -> (i32, i32) {
    %c0_i32 = arith.constant 0 : i32
    %c0_i32_0 = arith.constant 0 : i32
    %c0_i32_1 = arith.constant 0 : i32
    return %c0_i32, %c0_i32_0 : i32, i32
  }
}

</mosaic_0001>

<llo_original>
// kernel: tpu_custom_call.1
$region0: #{tpu_custom_call.1}
  #allocation0 [shape = 'u32[]', space=smem, size = 0x4, offset = 0x4, fixed_abs, tag = 'smem constant byte address 0x4 - core index']
  #allocation1 [shape = 'u32[144,128]{1,0:T(1,128)}', space=vmem, size = 0x12000, scoped, tag = 'internal scratch']
  %s0 = inlined_call_operand.hbm [shape: f32[16,32], index: 0, kind: input, shape index: {}]
  %s1 = inlined_call_operand.hbm [shape: f32[4,32,32], index: 1, kind: input, shape index: {}]
  %s2 = inlined_call_operand.hbm [shape: f32[24,32], index: 2, kind: input, shape index: {}]
  %s3 = inlined_call_operand.hbm [shape: f32[16,32], index: 3, kind: output, shape index: {}]
  %s4 = sld [smem:[#allocation0]]
  $region34: #{tpu_custom_call.1} parent=0
    _
  %s6 = ssub.s32 1, %s4
  %s7 = scalar_select 0, %s6, %s4
  $region1: #{tpu_custom_call.1} parent=0
    #allocation2 [shape = 'u8[8192]{0}', space=vmem, size = 0x2000, scoped, tag = 'input window, operand 0, single buffered']
    #allocation3 [shape = 's32[1]{0}', space=sflag, size = 0x4, scoped, tag = 'scoped memory for tpu_custom_call.1']
    #allocation4 [shape = 's32[1]{0}', space=sflag, size = 0x4, scoped, tag = 'scoped memory for tpu_custom_call.1']
    #allocation5 [shape = 'u8[65536]{0}', space=vmem, size = 0x10000, scoped, tag = 'input window, operand 1, single buffered']
    #allocation6 [shape = 's32[1]{0}', space=sflag, size = 0x4, scoped, tag = 'scoped memory for tpu_custom_call.1']
    #allocation7 [shape = 'u8[12288]{0}', space=vmem, size = 0x3000, scoped, tag = 'input window, operand 2, single buffered']
    #allocation8 [shape = 'u8[8192]{0}', space=vmem, size = 0x2000, scoped, tag = 'output window, operand 0, single buffered']
    %8 = vsyncpa [#allocation3], 0
    %9 = vsyncpa [#allocation6], 0
    %10 = vsyncpa [#allocation4], 0
    // Predicated region
    $region2: #{tpu_custom_call.1} parent=1 // pred_check
      _
    $region3: #{tpu_custom_call.1} parent=1 // pred_check_branch
      %12 = sbr.rel (0) target = $region5
    $region4: #{tpu_custom_call.1} parent=1 // pred_region
      %s14 = ssub.s32 256, 256
      %15 = vsyncadd [#allocation3], %s14
      %s16 = sshll.u32 [#allocation2], 4
      %s17 = int_to_ptr.vmem [resolvable:$true] %s16
      %22 = dma.hbm_to_vmem [thread:$0]  %s0, 256, %s17, [#allocation3], 128, 128, 8
    $region5: #{tpu_custom_call.1} parent=1 // pred_fallthru
      _
    // Predicated region
    $region6: #{tpu_custom_call.1} parent=1 // pred_check
      _
    $region7: #{tpu_custom_call.1} parent=1 // pred_check_branch
      %24 = sbr.rel (0) target = $region9
    $region8: #{tpu_custom_call.1} parent=1 // pred_region
      %s26 = ssub.s32 2048, 2048
      %27 = vsyncadd [#allocation6], %s26
      %s28 = sshll.u32 [#allocation5], 4
      %s29 = int_to_ptr.vmem [resolvable:$true] %s28
      %34 = dma.hbm_to_vmem [thread:$0]  %s1, 2048, %s29, [#allocation6], 128, 128, 8
    $region9: #{tpu_custom_call.1} parent=1 // pred_fallthru
      _
    // Predicated region
    $region10: #{tpu_custom_call.1} parent=1 // pred_check
      _
    $region11: #{tpu_custom_call.1} parent=1 // pred_check_branch
      %36 = sbr.rel (0) target = $region13
    $region12: #{tpu_custom_call.1} parent=1 // pred_region
      %s38 = ssub.s32 384, 384
      %39 = vsyncadd [#allocation6], %s38
      %s40 = sshll.u32 [#allocation7], 4
      %s41 = int_to_ptr.vmem [resolvable:$true] %s40
      %46 = dma.hbm_to_vmem [thread:$0]  %s2, 384, %s41, [#allocation6], 128, 128, 8
    $region13: #{tpu_custom_call.1} parent=1 // pred_fallthru
      _
    // Predicated region
    $region14: #{tpu_custom_call.1} parent=1 // pred_check
      _
    $region15: #{tpu_custom_call.1} parent=1 // pred_check_branch
      %48 = sbr.rel (0) target = $region17
    $region16: #{tpu_custom_call.1} parent=1 // pred_region
      %49 = dma.done [#allocation3], 256
    $region17: #{tpu_custom_call.1} parent=1 // pred_fallthru
      _
    // Predicated region
    $region18: #{tpu_custom_call.1} parent=1 // pred_check
      _
    $region19: #{tpu_custom_call.1} parent=1 // pred_check_branch
      %51 = sbr.rel (0) target = $region21
    $region20: #{tpu_custom_call.1} parent=1 // pred_region
      %52 = dma.done [#allocation6], 2048
    $region21: #{tpu_custom_call.1} parent=1 // pred_fallthru
      _
    // Predicated region
    $region22: #{tpu_custom_call.1} parent=1 // pred_check
      _
    $region23: #{tpu_custom_call.1} parent=1 // pred_check_branch
      %54 = sbr.rel (0) target = $region25
    $region24: #{tpu_custom_call.1} parent=1 // pred_region
      %55 = dma.done [#allocation6], 384
    $region25: #{tpu_custom_call.1} parent=1 // pred_fallthru
      _
    %v56 = vld [vmem:[#allocation2] sm:$0xff]
    %v57 = vld [vmem:[#allocation2 + $0x8] sm:$0xff]
    %v58 = vld [vmem:[#allocation5] sm:$0xff]
    %v59 = vld [vmem:[#allocation5 + $0x8] sm:$0xff]
    %v60 = vld [vmem:[#allocation5 + $0x10] sm:$0xff]
    %v61 = vld [vmem:[#allocation5 + $0x18] sm:$0xff]
    %s62 = scalar_lea.vmem [#allocation5], 32
    %v63 = vld [vmem:[%s62] sm:$0xff]
    %v64 = vld [vmem:[%s62 + $0x8] sm:$0xff]
    %v65 = vld [vmem:[%s62 + $0x10] sm:$0xff]
    %v66 = vld [vmem:[%s62 + $0x18] sm:$0xff]
    %s67 = scalar_lea.vmem [#allocation5], 64
    %v68 = vld [vmem:[%s67] sm:$0xff]
    %v69 = vld [vmem:[%s67 + $0x8] sm:$0xff]
    %v70 = vld [vmem:[%s67 + $0x10] sm:$0xff]
    %v71 = vld [vmem:[%s67 + $0x18] sm:$0xff]
    %s72 = scalar_lea.vmem [#allocation5], 96
    %v73 = vld [vmem:[%s72] sm:$0xff]
    %v74 = vld [vmem:[%s72 + $0x8] sm:$0xff]
    %v75 = vld [vmem:[%s72 + $0x10] sm:$0xff]
    %v76 = vld [vmem:[%s72 + $0x18] sm:$0xff]
    %vm77 = vcmask 261120
    %v79 = vsel %vm77, %v56, 0
    %v82 = vsel %vm77, %v57, 0
    %84 = vmatprep.subr.mxu0 0.0
    %85 = vmatpush1.msra.mxu0 %v58
    %86 = vmatprep.subr.mxu0 0.0
    %87 = vmatpush1.msra.mxu0 %v59
    %88 = vmatprep.subr.mxu0 0.0
    %89 = vmatpush1.msra.mxu0 %v60
    %90 = vmatprep.subr.mxu0 0.0
    %91 = vmatpush1.msra.mxu0 %v61
    %92 = vmatprep.subr.mxu0 0.0
    %93 = vmatpush1.msra.mxu0 0.0
    %94 = vmatprep.subr.mxu0 0.0
    %95 = vmatpush1.msra.mxu0 0.0
    %96 = vmatprep.subr.mxu0 0.0
    %97 = vmatpush1.msra.mxu0 0.0
    %98 = vmatprep.subr.mxu0 0.0
    %99 = vmatpush1.msra.mxu0 0.0
    %100 = vmatprep.subr.mxu0 0.0
    %101 = vmatpush1.msra.mxu0 0.0
    %102 = vmatprep.subr.mxu0 0.0
    %103 = vmatpush1.msra.mxu0 0.0
    %104 = vmatprep.subr.mxu0 0.0
    %105 = vmatpush1.msra.mxu0 0.0
    %106 = vmatprep.subr.mxu0 0.0
    %107 = vmatpush1.msra.mxu0 0.0
    %108 = vmatprep.subr.mxu0 0.0
    %109 = vmatpush1.msra.mxu0 0.0
    %110 = vmatprep.subr.mxu0 0.0
    %111 = vmatpush1.msra.mxu0 0.0
    %112 = vmatprep.subr.mxu0 0.0
    %113 = vmatpush1.msra.mxu0 0.0
    %114 = vmatprep.subr.mxu0 0.0
    %115 = vmatpush1.msra.mxu0 0.0
    %116 = vmatprep.subr.mxu0 0.0
    %117 = vmatpush1.msra.mxu0 0.0
    %118 = vmatprep.subr.mxu0 0.0
    %119 = vmatpush1.msra.mxu0 0.0
    %120 = vmatprep.subr.mxu0 0.0
    %121 = vmatpush1.msra.mxu0 0.0
    %122 = vmatprep.subr.mxu0 0.0
    %123 = vmatpush1.msra.mxu0 0.0
    %124 = vmatprep.subr.mxu0 0.0
    %125 = vmatpush1.msra.mxu0 0.0
    %126 = vmatprep.subr.mxu0 0.0
    %127 = vmatpush1.msra.mxu0 0.0
    %128 = vmatprep.subr.mxu0 0.0
    %129 = vmatpush1.msra.mxu0 0.0
    %130 = vmatprep.subr.mxu0 0.0
    %131 = vmatpush1.msra.mxu0 0.0
    %132 = vmatprep.subr.mxu0 0.0
    %133 = vmatpush1.msra.mxu0 0.0
    %134 = vmatprep.subr.mxu0 0.0
    %135 = vmatpush1.msra.mxu0 0.0
    %136 = vmatprep.subr.mxu0 0.0
    %137 = vmatpush1.msra.mxu0 0.0
    %138 = vmatprep.subr.mxu0 0.0
    %139 = vmatpush1.msra.mxu0 0.0
    %140 = vmatprep.subr.mxu0 0.0
    %141 = vmatpush1.msra.mxu0 0.0
    %142 = vmatprep.subr.mxu0 0.0
    %143 = vmatpush1.msra.mxu0 0.0
    %144 = vmatprep.subr.mxu0 0.0
    %145 = vmatpush1.msra.mxu0 0.0
    %146 = vmatprep.subr.mxu0 0.0
    %147 = vmatpush1.msra.mxu0 0.0
    %148 = vmatprep.mubr.f32.mxu0 0.0
    %149 = vmatmul.mubr.f32.gmra.mrb[0].mxu0 %v79
    %v150 = vpop.f32.mrb[0].mxu0
    %v151 = vadd.f32 0.0, %v150
    %v152 = vpop.f32.mrb[0].mxu0
    %153 = vmatprep.mubr.f32.mxu0 0.0
    %154 = vmatmul.mubr.f32.gmra.mrb[0].mxu0 %v82
    %v155 = vpop.f32.mrb[0].mxu0
    %v156 = vadd.f32 0.0, %v155
    %v157 = vpop.f32.mrb[0].mxu0
    %158 = vdwg.mxu0
    %159 = vmatprep.subr.mxu0 0.0
    %160 = vmatpush1.msra.mxu0 %v63
    %161 = vmatprep.subr.mxu0 0.0
    %162 = vmatpush1.msra.mxu0 %v64
    %163 = vmatprep.subr.mxu0 0.0
    %164 = vmatpush1.msra.mxu0 %v65
    %165 = vmatprep.subr.mxu0 0.0
    %166 = vmatpush1.msra.mxu0 %v66
    %167 = vmatprep.subr.mxu0 0.0
    %168 = vmatpush1.msra.mxu0 0.0
    %169 = vmatprep.subr.mxu0 0.0
    %170 = vmatpush1.msra.mxu0 0.0
    %171 = vmatprep.subr.mxu0 0.0
    %172 = vmatpush1.msra.mxu0 0.0
    %173 = vmatprep.subr.mxu0 0.0
    %174 = vmatpush1.msra.mxu0 0.0
    %175 = vmatprep.subr.mxu0 0.0
    %176 = vmatpush1.msra.mxu0 0.0
    %177 = vmatprep.subr.mxu0 0.0
    %178 = vmatpush1.msra.mxu0 0.0
    %179 = vmatprep.subr.mxu0 0.0
    %180 = vmatpush1.msra.mxu0 0.0
    %181 = vmatprep.subr.mxu0 0.0
    %182 = vmatpush1.msra.mxu0 0.0
    %183 = vmatprep.subr.mxu0 0.0
    %184 = vmatpush1.msra.mxu0 0.0
    %185 = vmatprep.subr.mxu0 0.0
    %186 = vmatpush1.msra.mxu0 0.0
    %187 = vmatprep.subr.mxu0 0.0
    %188 = vmatpush1.msra.mxu0 0.0
    %189 = vmatprep.subr.mxu0 0.0
    %190 = vmatpush1.msra.mxu0 0.0
    %191 = vmatprep.subr.mxu0 0.0
    %192 = vmatpush1.msra.mxu0 0.0
    %193 = vmatprep.subr.mxu0 0.0
    %194 = vmatpush1.msra.mxu0 0.0
    %195 = vmatprep.subr.mxu0 0.0
    %196 = vmatpush1.msra.mxu0 0.0
    %197 = vmatprep.subr.mxu0 0.0
    %198 = vmatpush1.msra.mxu0 0.0
    %199 = vmatprep.subr.mxu0 0.0
    %200 = vmatpush1.msra.mxu0 0.0
    %201 = vmatprep.subr.mxu0 0.0
    %202 = vmatpush1.msra.mxu0 0.0
    %203 = vmatprep.subr.mxu0 0.0
    %204 = vmatpush1.msra.mxu0 0.0
    %205 = vmatprep.subr.mxu0 0.0
    %206 = vmatpush1.msra.mxu0 0.0
    %207 = vmatprep.subr.mxu0 0.0
    %208 = vmatpush1.msra.mxu0 0.0
    %209 = vmatprep.subr.mxu0 0.0
    %210 = vmatpush1.msra.mxu0 0.0
    %211 = vmatprep.subr.mxu0 0.0
    %212 = vmatpush1.msra.mxu0 0.0
    %213 = vmatprep.subr.mxu0 0.0
    %214 = vmatpush1.msra.mxu0 0.0
    %215 = vmatprep.subr.mxu0 0.0
    %216 = vmatpush1.msra.mxu0 0.0
    %217 = vmatprep.subr.mxu0 0.0
    %218 = vmatpush1.msra.mxu0 0.0
    %219 = vmatprep.subr.mxu0 0.0
    %220 = vmatpush1.msra.mxu0 0.0
    %221 = vmatprep.subr.mxu0 0.0
    %222 = vmatpush1.msra.mxu0 0.0
    %223 = vmatprep.mubr.f32.mxu0 0.0
    %224 = vmatmul.mubr.f32.gmra.mrb[0].mxu0 %v79
    %v225 = vpop.f32.mrb[0].mxu0
    %v226 = vadd.f32 0.0, %v225
    %v227 = vpop.f32.mrb[0].mxu0
    %228 = vmatprep.mubr.f32.mxu0 0.0
    %229 = vmatmul.mubr.f32.gmra.mrb[0].mxu0 %v82
    %v230 = vpop.f32.mrb[0].mxu0
    %v231 = vadd.f32 0.0, %v230
    %v232 = vpop.f32.mrb[0].mxu0
    %233 = vdwg.mxu0
    %234 = vmatprep.subr.mxu0 0.0
    %235 = vmatpush1.msra.mxu0 %v68
    %236 = vmatprep.subr.mxu0 0.0
    %237 = vmatpush1.msra.mxu0 %v69
    %238 = vmatprep.subr.mxu0 0.0
    %239 = vmatpush1.msra.mxu0 %v70
    %240 = vmatprep.subr.mxu0 0.0
    %241 = vmatpush1.msra.mxu0 %v71
    %242 = vmatprep.subr.mxu0 0.0
    %243 = vmatpush1.msra.mxu0 0.0
    %244 = vmatprep.subr.mxu0 0.0
    %245 = vmatpush1.msra.mxu0 0.0
    %246 = vmatprep.subr.mxu0 0.0
    %247 = vmatpush1.msra.mxu0 0.0
    %248 = vmatprep.subr.mxu0 0.0
    %249 = vmatpush1.msra.mxu0 0.0
    %250 = vmatprep.subr.mxu0 0.0
    %251 = vmatpush1.msra.mxu0 0.0
    %252 = vmatprep.subr.mxu0 0.0
    %253 = vmatpush1.msra.mxu0 0.0
    %254 = vmatprep.subr.mxu0 0.0
    %255 = vmatpush1.msra.mxu0 0.0
    %256 = vmatprep.subr.mxu0 0.0
    %257 = vmatpush1.msra.mxu0 0.0
    %258 = vmatprep.subr.mxu0 0.0
    %259 = vmatpush1.msra.mxu0 0.0
    %260 = vmatprep.subr.mxu0 0.0
    %261 = vmatpush1.msra.mxu0 0.0
    %262 = vmatprep.subr.mxu0 0.0
    %263 = vmatpush1.msra.mxu0 0.0
    %264 = vmatprep.subr.mxu0 0.0
    %265 = vmatpush1.msra.mxu0 0.0
    %266 = vmatprep.subr.mxu0 0.0
    %267 = vmatpush1.msra.mxu0 0.0
    %268 = vmatprep.subr.mxu0 0.0
    %269 = vmatpush1.msra.mxu0 0.0
    %270 = vmatprep.subr.mxu0 0.0
    %271 = vmatpush1.msra.mxu0 0.0
    %272 = vmatprep.subr.mxu0 0.0
    %273 = vmatpush1.msra.mxu0 0.0
    %274 = vmatprep.subr.mxu0 0.0
    %275 = vmatpush1.msra.mxu0 0.0
    %276 = vmatprep.subr.mxu0 0.0
    %277 = vmatpush1.msra.mxu0 0.0
    %278 = vmatprep.subr.mxu0 0.0
    %279 = vmatpush1.msra.mxu0 0.0
    %280 = vmatprep.subr.mxu0 0.0
    %281 = vmatpush1.msra.mxu0 0.0
    %282 = vmatprep.subr.mxu0 0.0
    %283 = vmatpush1.msra.mxu0 0.0
    %284 = vmatprep.subr.mxu0 0.0
    %285 = vmatpush1.msra.mxu0 0.0
    %286 = vmatprep.subr.mxu0 0.0
    %287 = vmatpush1.msra.mxu0 0.0
    %288 = vmatprep.subr.mxu0 0.0
    %289 = vmatpush1.msra.mxu0 0.0
    %290 = vmatprep.subr.mxu0 0.0
    %291 = vmatpush1.msra.mxu0 0.0
    %292 = vmatprep.subr.mxu0 0.0
    %293 = vmatpush1.msra.mxu0 0.0
    %294 = vmatprep.subr.mxu0 0.0
    %295 = vmatpush1.msra.mxu0 0.0
    %296 = vmatprep.subr.mxu0 0.0
    %297 = vmatpush1.msra.mxu0 0.0
    %298 = vmatprep.mubr.f32.mxu0 0.0
    %299 = vmatmul.mubr.f32.gmra.mrb[0].mxu0 %v79
    %v300 = vpop.f32.mrb[0].mxu0
    %v301 = vadd.f32 0.0, %v300
    %v302 = vpop.f32.mrb[0].mxu0
    %303 = vmatprep.mubr.f32.mxu0 0.0
    %304 = vmatmul.mubr.f32.gmra.mrb[0].mxu0 %v82
    %v305 = vpop.f32.mrb[0].mxu0
    %v306 = vadd.f32 0.0, %v305
    %v307 = vpop.f32.mrb[0].mxu0
    %308 = vdwg.mxu0
    %v309 = vld [vmem:[#allocation7 + $0x8] sm:$0xff]
    %v310 = vld [vmem:[#allocation7 + $0x10] sm:$0xff]
    %v312 = vcombine.high %v309, %v309
    %v314 = vunpack.c.l.s4 1966171168
    %v315 = vunpack.c.0.s8 %v314
    %v316 = vlaneseq
    %v317 = vshrl.u32 %v316, 7
    %v318 = vsub.s32 %v315, %v317
    %v319 = vrot.slane %v309, %v318
    %v321 = vunpack.c.l.s4 1966171168
    %v322 = vunpack.c.0.s8 %v321
    %v323 = vlaneseq
    %v324 = vshrl.u32 %v323, 7
    %v325 = vsub.s32 %v322, %v324
    %v326 = vrot.slane %v312, %v325
    %v327 = vcombine.high %v319, %v319
    %v328 = vcombine.high %v326, %v326
    %v330 = vunpack.c.l.s4 1966171168
    %v331 = vunpack.c.0.s8 %v330
    %v332 = vlaneseq
    %v333 = vshrl.u32 %v332, 7
    %v334 = vsub.s32 %v331, %v333
    %v335 = vrot.slane %v319, %v334
    %v337 = vunpack.c.l.s4 1966171168
    %v338 = vunpack.c.0.s8 %v337
    %v339 = vlaneseq
    %v340 = vshrl.u32 %v339, 7
    %v341 = vsub.s32 %v338, %v340
    %v342 = vrot.slane %v326, %v341
    %v344 = vunpack.c.l.s4 1966171168
    %v345 = vunpack.c.0.s8 %v344
    %v346 = vlaneseq
    %v347 = vshrl.u32 %v346, 7
    %v348 = vsub.s32 %v345, %v347
    %v349 = vrot.slane %v327, %v348
    %v351 = vunpack.c.l.s4 1966171168
    %v352 = vunpack.c.0.s8 %v351
    %v353 = vlaneseq
    %v354 = vshrl.u32 %v353, 7
    %v355 = vsub.s32 %v352, %v354
    %v356 = vrot.slane %v328, %v355
    %v357 = vcombine.high %v335, %v335
    %v358 = vcombine.high %v342, %v342
    %v359 = vcombine.high %v349, %v349
    %v360 = vcombine.high %v356, %v356
    %v361 = vlaneseq
    %v362 = vshrl.u32 %v361, 7
    %v363 = vsub.s32 0, %v362
    %v364 = vrot.slane %v335, %v363
    %v365 = vlaneseq
    %v366 = vshrl.u32 %v365, 7
    %v367 = vsub.s32 0, %v366
    %v368 = vrot.slane %v349, %v367
    %v369 = vlaneseq
    %v370 = vshrl.u32 %v369, 7
    %v371 = vsub.s32 0, %v370
    %v372 = vrot.slane %v357, %v371
    %v373 = vlaneseq
    %v374 = vshrl.u32 %v373, 7
    %v375 = vsub.s32 0, %v374
    %v376 = vrot.slane %v359, %v375
    %v377 = vlaneseq
    %v378 = vshrl.u32 %v377, 7
    %v379 = vsub.s32 0, %v378
    %v380 = vrot.slane %v342, %v379
    %v381 = vlaneseq
    %v382 = vshrl.u32 %v381, 7
    %v383 = vsub.s32 0, %v382
    %v384 = vrot.slane %v356, %v383
    %v385 = vlaneseq
    %v386 = vshrl.u32 %v385, 7
    %v387 = vsub.s32 0, %v386
    %v388 = vrot.slane %v358, %v387
    %v389 = vlaneseq
    %v390 = vshrl.u32 %v389, 7
    %v391 = vsub.s32 0, %v390
    %v392 = vrot.slane %v360, %v391
    %v401 = vmul.f32 %v151, %v364
    %v402 = vmul.f32 %v151, %v368
    %v403 = vmul.f32 %v151, %v372
    %v404 = vmul.f32 %v151, %v376
    %v405 = vmul.f32 %v151, %v380
    %v406 = vmul.f32 %v151, %v384
    %v407 = vmul.f32 %v151, %v388
    %v408 = vmul.f32 %v151, %v392
    %v409 = vmul.f32 %v156, %v364
    %v410 = vmul.f32 %v156, %v368
    %v411 = vmul.f32 %v156, %v372
    %v412 = vmul.f32 %v156, %v376
    %v413 = vmul.f32 %v156, %v380
    %v414 = vmul.f32 %v156, %v384
    %v415 = vmul.f32 %v156, %v388
    %v416 = vmul.f32 %v156, %v392
    %v418 = vsel %vm77, %v401, 0
    %v421 = vsel %vm77, %v402, 0
    %v424 = vsel %vm77, %v403, 0
    %v427 = vsel %vm77, %v404, 0
    %v430 = vsel %vm77, %v405, 0
    %v433 = vsel %vm77, %v406, 0
    %v436 = vsel %vm77, %v407, 0
    %v439 = vsel %vm77, %v408, 0
    %v442 = vsel %vm77, %v226, 0
    %444 = vmatprep.subr.mxu0 0.0
    %445 = vmatpush1.xpose.msra.mxu0 %v442
    %446 = vmatprep.subr.mxu0 0.0
    %447 = vmatpush1.xpose.msra.mxu0 0.0
    %448 = vmatprep.subr.mxu0 0.0
    %449 = vmatpush1.xpose.msra.mxu0 0.0
    %450 = vmatprep.subr.mxu0 0.0
    %451 = vmatpush1.xpose.msra.mxu0 0.0
    %452 = vmatprep.subr.mxu0 0.0
    %453 = vmatpush1.xpose.msra.mxu0 0.0
    %454 = vmatprep.subr.mxu0 0.0
    %455 = vmatpush1.xpose.msra.mxu0 0.0
    %456 = vmatprep.subr.mxu0 0.0
    %457 = vmatpush1.xpose.msra.mxu0 0.0
    %458 = vmatprep.subr.mxu0 0.0
    %459 = vmatpush1.xpose.msra.mxu0 0.0
    %460 = vmatprep.subr.mxu0 0.0
    %461 = vmatpush1.xpose.msra.mxu0 0.0
    %462 = vmatprep.subr.mxu0 0.0
    %463 = vmatpush1.xpose.msra.mxu0 0.0
    %464 = vmatprep.subr.mxu0 0.0
    %465 = vmatpush1.xpose.msra.mxu0 0.0
    %466 = vmatprep.subr.mxu0 0.0
    %467 = vmatpush1.xpose.msra.mxu0 0.0
    %468 = vmatprep.subr.mxu0 0.0
    %469 = vmatpush1.xpose.msra.mxu0 0.0
    %470 = vmatprep.subr.mxu0 0.0
    %471 = vmatpush1.xpose.msra.mxu0 0.0
    %472 = vmatprep.subr.mxu0 0.0
    %473 = vmatpush1.xpose.msra.mxu0 0.0
    %474 = vmatprep.subr.mxu0 0.0
    %475 = vmatpush1.xpose.msra.mxu0 0.0
    %476 = vmatprep.subr.mxu0 0.0
    %477 = vmatpush1.xpose.msra.mxu0 0.0
    %478 = vmatprep.subr.mxu0 0.0
    %479 = vmatpush1.xpose.msra.mxu0 0.0
    %480 = vmatprep.subr.mxu0 0.0
    %481 = vmatpush1.xpose.msra.mxu0 0.0
    %482 = vmatprep.subr.mxu0 0.0
    %483 = vmatpush1.xpose.msra.mxu0 0.0
    %484 = vmatprep.subr.mxu0 0.0
    %485 = vmatpush1.xpose.msra.mxu0 0.0
    %486 = vmatprep.subr.mxu0 0.0
    %487 = vmatpush1.xpose.msra.mxu0 0.0
    %488 = vmatprep.subr.mxu0 0.0
    %489 = vmatpush1.xpose.msra.mxu0 0.0
    %490 = vmatprep.subr.mxu0 0.0
    %491 = vmatpush1.xpose.msra.mxu0 0.0
    %492 = vmatprep.subr.mxu0 0.0
    %493 = vmatpush1.xpose.msra.mxu0 0.0
    %494 = vmatprep.subr.mxu0 0.0
    %495 = vmatpush1.xpose.msra.mxu0 0.0
    %496 = vmatprep.subr.mxu0 0.0
    %497 = vmatpush1.xpose.msra.mxu0 0.0
    %498 = vmatprep.subr.mxu0 0.0
    %499 = vmatpush1.xpose.msra.mxu0 0.0
    %500 = vmatprep.subr.mxu0 0.0
    %501 = vmatpush1.xpose.msra.mxu0 0.0
    %502 = vmatprep.subr.mxu0 0.0
    %503 = vmatpush1.xpose.msra.mxu0 0.0
    %504 = vmatprep.subr.mxu0 0.0
    %505 = vmatpush1.xpose.msra.mxu0 0.0
    %506 = vmatprep.subr.mxu0 0.0
    %507 = vmatpush1.xpose.msra.mxu0 0.0
    %508 = vmatprep.mubr.f32.mxu0 0.0
    %509 = vmatmul.mubr.f32.gmra.mrb[0].mxu0 %v418
    %v510 = vpop.f32.mrb[0].mxu0
    %v511 = vadd.f32 0.0, %v510
    %v512 = vpop.f32.mrb[0].mxu0
    %513 = vmatprep.mubr.f32.mxu0 0.0
    %514 = vmatmul.mubr.f32.gmra.mrb[0].mxu0 %v421
    %v515 = vpop.f32.mrb[0].mxu0
    %v516 = vadd.f32 0.0, %v515
    %v517 = vpop.f32.mrb[0].mxu0
    %518 = vmatprep.mubr.f32.mxu0 0.0
    %519 = vmatmul.mubr.f32.gmra.mrb[0].mxu0 %v424
    %v520 = vpop.f32.mrb[0].mxu0
    %v521 = vadd.f32 0.0, %v520
    %v522 = vpop.f32.mrb[0].mxu0
    %523 = vmatprep.mubr.f32.mxu0 0.0
    %524 = vmatmul.mubr.f32.gmra.mrb[0].mxu0 %v427
    %v525 = vpop.f32.mrb[0].mxu0
    %v526 = vadd.f32 0.0, %v525
    %v527 = vpop.f32.mrb[0].mxu0
    %528 = vmatprep.mubr.f32.mxu0 0.0
    %529 = vmatmul.mubr.f32.gmra.mrb[0].mxu0 %v430
    %v530 = vpop.f32.mrb[0].mxu0
    %v531 = vadd.f32 0.0, %v530
    %v532 = vpop.f32.mrb[0].mxu0
    %533 = vmatprep.mubr.f32.mxu0 0.0
    %534 = vmatmul.mubr.f32.gmra.mrb[0].mxu0 %v433
    %v535 = vpop.f32.mrb[0].mxu0
    %v536 = vadd.f32 0.0, %v535
    %v537 = vpop.f32.mrb[0].mxu0
    %538 = vmatprep.mubr.f32.mxu0 0.0
    %539 = vmatmul.mubr.f32.gmra.mrb[0].mxu0 %v436
    %v540 = vpop.f32.mrb[0].mxu0
    %v541 = vadd.f32 0.0, %v540
    %v542 = vpop.f32.mrb[0].mxu0
    %543 = vmatprep.mubr.f32.mxu0 0.0
    %544 = vmatmul.mubr.f32.gmra.mrb[0].mxu0 %v439
    %v545 = vpop.f32.mrb[0].mxu0
    %v546 = vadd.f32 0.0, %v545
    %v547 = vpop.f32.mrb[0].mxu0
    %548 = vdwg.mxu0
    %v550 = vsel %vm77, %v409, 0
    %v553 = vsel %vm77, %v410, 0
    %v556 = vsel %vm77, %v411, 0
    %v559 = vsel %vm77, %v412, 0
    %v562 = vsel %vm77, %v413, 0
    %v565 = vsel %vm77, %v414, 0
    %v568 = vsel %vm77, %v415, 0
    %v571 = vsel %vm77, %v416, 0
    %v574 = vsel %vm77, %v231, 0
    %576 = vmatprep.subr.mxu0 0.0
    %577 = vmatpush1.xpose.msra.mxu0 %v574
    %578 = vmatprep.subr.mxu0 0.0
    %579 = vmatpush1.xpose.msra.mxu0 0.0
    %580 = vmatprep.subr.mxu0 0.0
    %581 = vmatpush1.xpose.msra.mxu0 0.0
    %582 = vmatprep.subr.mxu0 0.0
    %583 = vmatpush1.xpose.msra.mxu0 0.0
    %584 = vmatprep.subr.mxu0 0.0
    %585 = vmatpush1.xpose.msra.mxu0 0.0
    %586 = vmatprep.subr.mxu0 0.0
    %587 = vmatpush1.xpose.msra.mxu0 0.0
    %588 = vmatprep.subr.mxu0 0.0
    %589 = vmatpush1.xpose.msra.mxu0 0.0
    %590 = vmatprep.subr.mxu0 0.0
    %591 = vmatpush1.xpose.msra.mxu0 0.0
    %592 = vmatprep.subr.mxu0 0.0
    %593 = vmatpush1.xpose.msra.mxu0 0.0
    %594 = vmatprep.subr.mxu0 0.0
    %595 = vmatpush1.xpose.msra.mxu0 0.0
    %596 = vmatprep.subr.mxu0 0.0
    %597 = vmatpush1.xpose.msra.mxu0 0.0
    %598 = vmatprep.subr.mxu0 0.0
    %599 = vmatpush1.xpose.msra.mxu0 0.0
    %600 = vmatprep.subr.mxu0 0.0
    %601 = vmatpush1.xpose.msra.mxu0 0.0
    %602 = vmatprep.subr.mxu0 0.0
    %603 = vmatpush1.xpose.msra.mxu0 0.0
    %604 = vmatprep.subr.mxu0 0.0
    %605 = vmatpush1.xpose.msra.mxu0 0.0
    %606 = vmatprep.subr.mxu0 0.0
    %607 = vmatpush1.xpose.msra.mxu0 0.0
    %608 = vmatprep.subr.mxu0 0.0
    %609 = vmatpush1.xpose.msra.mxu0 0.0
    %610 = vmatprep.subr.mxu0 0.0
    %611 = vmatpush1.xpose.msra.mxu0 0.0
    %612 = vmatprep.subr.mxu0 0.0
    %613 = vmatpush1.xpose.msra.mxu0 0.0
    %614 = vmatprep.subr.mxu0 0.0
    %615 = vmatpush1.xpose.msra.mxu0 0.0
    %616 = vmatprep.subr.mxu0 0.0
    %617 = vmatpush1.xpose.msra.mxu0 0.0
    %618 = vmatprep.subr.mxu0 0.0
    %619 = vmatpush1.xpose.msra.mxu0 0.0
    %620 = vmatprep.subr.mxu0 0.0
    %621 = vmatpush1.xpose.msra.mxu0 0.0
    %622 = vmatprep.subr.mxu0 0.0
    %623 = vmatpush1.xpose.msra.mxu0 0.0
    %624 = vmatprep.subr.mxu0 0.0
    %625 = vmatpush1.xpose.msra.mxu0 0.0
    %626 = vmatprep.subr.mxu0 0.0
    %627 = vmatpush1.xpose.msra.mxu0 0.0
    %628 = vmatprep.subr.mxu0 0.0
    %629 = vmatpush1.xpose.msra.mxu0 0.0
    %630 = vmatprep.subr.mxu0 0.0
    %631 = vmatpush1.xpose.msra.mxu0 0.0
    %632 = vmatprep.subr.mxu0 0.0
    %633 = vmatpush1.xpose.msra.mxu0 0.0
    %634 = vmatprep.subr.mxu0 0.0
    %635 = vmatpush1.xpose.msra.mxu0 0.0
    %636 = vmatprep.subr.mxu0 0.0
    %637 = vmatpush1.xpose.msra.mxu0 0.0
    %638 = vmatprep.subr.mxu0 0.0
    %639 = vmatpush1.xpose.msra.mxu0 0.0
    %640 = vmatprep.mubr.f32.mxu0 0.0
    %641 = vmatmul.mubr.f32.gmra.mrb[0].mxu0 %v550
    %v642 = vpop.f32.mrb[0].mxu0
    %v643 = vadd.f32 0.0, %v642
    %v644 = vpop.f32.mrb[0].mxu0
    %645 = vmatprep.mubr.f32.mxu0 0.0
    %646 = vmatmul.mubr.f32.gmra.mrb[0].mxu0 %v553
    %v647 = vpop.f32.mrb[0].mxu0
    %v648 = vadd.f32 0.0, %v647
    %v649 = vpop.f32.mrb[0].mxu0
    %650 = vmatprep.mubr.f32.mxu0 0.0
    %651 = vmatmul.mubr.f32.gmra.mrb[0].mxu0 %v556
    %v652 = vpop.f32.mrb[0].mxu0
    %v653 = vadd.f32 0.0, %v652
    %v654 = vpop.f32.mrb[0].mxu0
    %655 = vmatprep.mubr.f32.mxu0 0.0
    %656 = vmatmul.mubr.f32.gmra.mrb[0].mxu0 %v559
    %v657 = vpop.f32.mrb[0].mxu0
    %v658 = vadd.f32 0.0, %v657
    %v659 = vpop.f32.mrb[0].mxu0
    %660 = vmatprep.mubr.f32.mxu0 0.0
    %661 = vmatmul.mubr.f32.gmra.mrb[0].mxu0 %v562
    %v662 = vpop.f32.mrb[0].mxu0
    %v663 = vadd.f32 0.0, %v662
    %v664 = vpop.f32.mrb[0].mxu0
    %665 = vmatprep.mubr.f32.mxu0 0.0
    %666 = vmatmul.mubr.f32.gmra.mrb[0].mxu0 %v565
    %v667 = vpop.f32.mrb[0].mxu0
    %v668 = vadd.f32 0.0, %v667
    %v669 = vpop.f32.mrb[0].mxu0
    %670 = vmatprep.mubr.f32.mxu0 0.0
    %671 = vmatmul.mubr.f32.gmra.mrb[0].mxu0 %v568
    %v672 = vpop.f32.mrb[0].mxu0
    %v673 = vadd.f32 0.0, %v672
    %v674 = vpop.f32.mrb[0].mxu0
    %675 = vmatprep.mubr.f32.mxu0 0.0
    %676 = vmatmul.mubr.f32.gmra.mrb[0].mxu0 %v571
    %v677 = vpop.f32.mrb[0].mxu0
    %v678 = vadd.f32 0.0, %v677
    %v679 = vpop.f32.mrb[0].mxu0
    %680 = vdwg.mxu0
    %vm681 = vcmask 64512
    %v682 = vsel %vm681, %v511, -inf
    %683 = vmax.xlane.f32.xlu0 %v682
    %v684 = vpop.xlane.xlu0 %683
    %v685 = vsel %vm681, %v516, -inf
    %686 = vmax.xlane.f32.xlu0 %v685
    %v687 = vpop.xlane.xlu0 %686
    %v688 = vsel %vm681, %v521, -inf
    %689 = vmax.xlane.f32.xlu0 %v688
    %v690 = vpop.xlane.xlu0 %689
    %v691 = vsel %vm681, %v526, -inf
    %692 = vmax.xlane.f32.xlu0 %v691
    %v693 = vpop.xlane.xlu0 %692
    %v694 = vsel %vm681, %v531, -inf
    %695 = vmax.xlane.f32.xlu0 %v694
    %v696 = vpop.xlane.xlu0 %695
    %v697 = vsel %vm681, %v536, -inf
    %698 = vmax.xlane.f32.xlu0 %v697
    %v699 = vpop.xlane.xlu0 %698
    %v700 = vsel %vm681, %v541, -inf
    %701 = vmax.xlane.f32.xlu0 %v700
    %v702 = vpop.xlane.xlu0 %701
    %v703 = vsel %vm681, %v546, -inf
    %704 = vmax.xlane.f32.xlu0 %v703
    %v705 = vpop.xlane.xlu0 %704
    %v706 = vsel %vm681, %v643, -inf
    %707 = vmax.xlane.f32.xlu0 %v706
    %v708 = vpop.xlane.xlu0 %707
    %v709 = vsel %vm681, %v648, -inf
    %710 = vmax.xlane.f32.xlu0 %v709
    %v711 = vpop.xlane.xlu0 %710
    %v712 = vsel %vm681, %v653, -inf
    %713 = vmax.xlane.f32.xlu0 %v712
    %v714 = vpop.xlane.xlu0 %713
    %v715 = vsel %vm681, %v658, -inf
    %716 = vmax.xlane.f32.xlu0 %v715
    %v717 = vpop.xlane.xlu0 %716
    %v718 = vsel %vm681, %v663, -inf
    %719 = vmax.xlane.f32.xlu0 %v718
    %v720 = vpop.xlane.xlu0 %719
    %v721 = vsel %vm681, %v668, -inf
    %722 = vmax.xlane.f32.xlu0 %v721
    %v723 = vpop.xlane.xlu0 %722
    %v724 = vsel %vm681, %v673, -inf
    %725 = vmax.xlane.f32.xlu0 %v724
    %v726 = vpop.xlane.xlu0 %725
    %v727 = vsel %vm681, %v678, -inf
    %728 = vmax.xlane.f32.xlu0 %v727
    %v729 = vpop.xlane.xlu0 %728
    %v730 = vsub.f32 %v511, %v684
    %v731 = vsub.f32 %v516, %v687
    %v732 = vsub.f32 %v521, %v690
    %v733 = vsub.f32 %v526, %v693
    %v734 = vsub.f32 %v531, %v696
    %v735 = vsub.f32 %v536, %v699
    %v736 = vsub.f32 %v541, %v702
    %v737 = vsub.f32 %v546, %v705
    %v738 = vsub.f32 %v643, %v708
    %v739 = vsub.f32 %v648, %v711
    %v740 = vsub.f32 %v653, %v714
    %v741 = vsub.f32 %v658, %v717
    %v742 = vsub.f32 %v663, %v720
    %v743 = vsub.f32 %v668, %v723
    %v744 = vsub.f32 %v673, %v726
    %v745 = vsub.f32 %v678, %v729
    %v746 = vmul.f32 %v730, 1.442695
    %v747 = vpow.pop %v746
    %v748 = vmul.f32 %v731, 1.442695
    %v749 = vpow.pop %v748
    %v750 = vmul.f32 %v732, 1.442695
    %v751 = vpow.pop %v750
    %v752 = vmul.f32 %v733, 1.442695
    %v753 = vpow.pop %v752
    %v754 = vmul.f32 %v734, 1.442695
    %v755 = vpow.pop %v754
    %v756 = vmul.f32 %v735, 1.442695
    %v757 = vpow.pop %v756
    %v758 = vmul.f32 %v736, 1.442695
    %v759 = vpow.pop %v758
    %v760 = vmul.f32 %v737, 1.442695
    %v761 = vpow.pop %v760
    %v762 = vmul.f32 %v738, 1.442695
    %v763 = vpow.pop %v762
    %v764 = vmul.f32 %v739, 1.442695
    %v765 = vpow.pop %v764
    %v766 = vmul.f32 %v740, 1.442695
    %v767 = vpow.pop %v766
    %v768 = vmul.f32 %v741, 1.442695
    %v769 = vpow.pop %v768
    %v770 = vmul.f32 %v742, 1.442695
    %v771 = vpow.pop %v770
    %v772 = vmul.f32 %v743, 1.442695
    %v773 = vpow.pop %v772
    %v774 = vmul.f32 %v744, 1.442695
    %v775 = vpow.pop %v774
    %v776 = vmul.f32 %v745, 1.442695
    %v777 = vpow.pop %v776
    %v778 = vsel %vm681, %v747, 0.0
    %779 = vadd.xlane.f32.xlu0 %v778
    %v780 = vpop.xlane.xlu0 %779
    %v781 = vsel %vm681, %v749, 0.0
    %782 = vadd.xlane.f32.xlu0 %v781
    %v783 = vpop.xlane.xlu0 %782
    %v784 = vsel %vm681, %v751, 0.0
    %785 = vadd.xlane.f32.xlu0 %v784
    %v786 = vpop.xlane.xlu0 %785
    %v787 = vsel %vm681, %v753, 0.0
    %788 = vadd.xlane.f32.xlu0 %v787
    %v789 = vpop.xlane.xlu0 %788
    %v790 = vsel %vm681, %v755, 0.0
    %791 = vadd.xlane.f32.xlu0 %v790
    %v792 = vpop.xlane.xlu0 %791
    %v793 = vsel %vm681, %v757, 0.0
    %794 = vadd.xlane.f32.xlu0 %v793
    %v795 = vpop.xlane.xlu0 %794
    %v796 = vsel %vm681, %v759, 0.0
    %797 = vadd.xlane.f32.xlu0 %v796
    %v798 = vpop.xlane.xlu0 %797
    %v799 = vsel %vm681, %v761, 0.0
    %800 = vadd.xlane.f32.xlu0 %v799
    %v801 = vpop.xlane.xlu0 %800
    %v802 = vsel %vm681, %v763, 0.0
    %803 = vadd.xlane.f32.xlu0 %v802
    %v804 = vpop.xlane.xlu0 %803
    %v805 = vsel %vm681, %v765, 0.0
    %806 = vadd.xlane.f32.xlu0 %v805
    %v807 = vpop.xlane.xlu0 %806
    %v808 = vsel %vm681, %v767, 0.0
    %809 = vadd.xlane.f32.xlu0 %v808
    %v810 = vpop.xlane.xlu0 %809
    %v811 = vsel %vm681, %v769, 0.0
    %812 = vadd.xlane.f32.xlu0 %v811
    %v813 = vpop.xlane.xlu0 %812
    %v814 = vsel %vm681, %v771, 0.0
    %815 = vadd.xlane.f32.xlu0 %v814
    %v816 = vpop.xlane.xlu0 %815
    %v817 = vsel %vm681, %v773, 0.0
    %818 = vadd.xlane.f32.xlu0 %v817
    %v819 = vpop.xlane.xlu0 %818
    %v820 = vsel %vm681, %v775, 0.0
    %821 = vadd.xlane.f32.xlu0 %v820
    %v822 = vpop.xlane.xlu0 %821
    %v823 = vsel %vm681, %v777, 0.0
    %824 = vadd.xlane.f32.xlu0 %v823
    %v825 = vpop.xlane.xlu0 %824
    %v826 = vrcp.pop %v780
    %v827 = vmul.f32 %v747, %v826
    %v828 = vrcp.pop %v783
    %v829 = vmul.f32 %v749, %v828
    %v830 = vrcp.pop %v786
    %v831 = vmul.f32 %v751, %v830
    %v832 = vrcp.pop %v789
    %v833 = vmul.f32 %v753, %v832
    %v834 = vrcp.pop %v792
    %v835 = vmul.f32 %v755, %v834
    %v836 = vrcp.pop %v795
    %v837 = vmul.f32 %v757, %v836
    %v838 = vrcp.pop %v798
    %v839 = vmul.f32 %v759, %v838
    %v840 = vrcp.pop %v801
    %v841 = vmul.f32 %v761, %v840
    %v842 = vrcp.pop %v804
    %v843 = vmul.f32 %v763, %v842
    %v844 = vrcp.pop %v807
    %v845 = vmul.f32 %v765, %v844
    %v846 = vrcp.pop %v810
    %v847 = vmul.f32 %v767, %v846
    %v848 = vrcp.pop %v813
    %v849 = vmul.f32 %v769, %v848
    %v850 = vrcp.pop %v816
    %v851 = vmul.f32 %v771, %v850
    %v852 = vrcp.pop %v819
    %v853 = vmul.f32 %v773, %v852
    %v854 = vrcp.pop %v822
    %v855 = vmul.f32 %v775, %v854
    %v856 = vrcp.pop %v825
    %v857 = vmul.f32 %v777, %v856
    %v859 = vsel %vm681, %v827, 0
    %v862 = vsel %vm681, %v829, 0
    %v865 = vsel %vm681, %v831, 0
    %v868 = vsel %vm681, %v833, 0
    %v871 = vsel %vm681, %v835, 0
    %v874 = vsel %vm681, %v837, 0
    %v877 = vsel %vm681, %v839, 0
    %v880 = vsel %vm681, %v841, 0
    %882 = vmatprep.subr.mxu0 0.0
    %883 = vmatpush1.msra.mxu0 %v301
    %884 = vmatprep.subr.mxu0 0.0
    %885 = vmatpush1.msra.mxu0 0.0
    %886 = vmatprep.subr.mxu0 0.0
    %887 = vmatpush1.msra.mxu0 0.0
    %888 = vmatprep.subr.mxu0 0.0
    %889 = vmatpush1.msra.mxu0 0.0
    %890 = vmatprep.subr.mxu0 0.0
    %891 = vmatpush1.msra.mxu0 0.0
    %892 = vmatprep.subr.mxu0 0.0
    %893 = vmatpush1.msra.mxu0 0.0
    %894 = vmatprep.subr.mxu0 0.0
    %895 = vmatpush1.msra.mxu0 0.0
    %896 = vmatprep.subr.mxu0 0.0
    %897 = vmatpush1.msra.mxu0 0.0
    %898 = vmatprep.subr.mxu0 0.0
    %899 = vmatpush1.msra.mxu0 0.0
    %900 = vmatprep.subr.mxu0 0.0
    %901 = vmatpush1.msra.mxu0 0.0
    %902 = vmatprep.subr.mxu0 0.0
    %903 = vmatpush1.msra.mxu0 0.0
    %904 = vmatprep.subr.mxu0 0.0
    %905 = vmatpush1.msra.mxu0 0.0
    %906 = vmatprep.subr.mxu0 0.0
    %907 = vmatpush1.msra.mxu0 0.0
    %908 = vmatprep.subr.mxu0 0.0
    %909 = vmatpush1.msra.mxu0 0.0
    %910 = vmatprep.subr.mxu0 0.0
    %911 = vmatpush1.msra.mxu0 0.0
    %912 = vmatprep.subr.mxu0 0.0
    %913 = vmatpush1.msra.mxu0 0.0
    %914 = vmatprep.subr.mxu0 0.0
    %915 = vmatpush1.msra.mxu0 0.0
    %916 = vmatprep.subr.mxu0 0.0
    %917 = vmatpush1.msra.mxu0 0.0
    %918 = vmatprep.subr.mxu0 0.0
    %919 = vmatpush1.msra.mxu0 0.0
    %920 = vmatprep.subr.mxu0 0.0
    %921 = vmatpush1.msra.mxu0 0.0
    %922 = vmatprep.subr.mxu0 0.0
    %923 = vmatpush1.msra.mxu0 0.0
    %924 = vmatprep.subr.mxu0 0.0
    %925 = vmatpush1.msra.mxu0 0.0
    %926 = vmatprep.subr.mxu0 0.0
    %927 = vmatpush1.msra.mxu0 0.0
    %928 = vmatprep.subr.mxu0 0.0
    %929 = vmatpush1.msra.mxu0 0.0
    %930 = vmatprep.subr.mxu0 0.0
    %931 = vmatpush1.msra.mxu0 0.0
    %932 = vmatprep.subr.mxu0 0.0
    %933 = vmatpush1.msra.mxu0 0.0
    %934 = vmatprep.subr.mxu0 0.0
    %935 = vmatpush1.msra.mxu0 0.0
    %936 = vmatprep.subr.mxu0 0.0
    %937 = vmatpush1.msra.mxu0 0.0
    %938 = vmatprep.subr.mxu0 0.0
    %939 = vmatpush1.msra.mxu0 0.0
    %940 = vmatprep.subr.mxu0 0.0
    %941 = vmatpush1.msra.mxu0 0.0
    %942 = vmatprep.subr.mxu0 0.0
    %943 = vmatpush1.msra.mxu0 0.0
    %944 = vmatprep.subr.mxu0 0.0
    %945 = vmatpush1.msra.mxu0 0.0
    %946 = vmatprep.mubr.f32.mxu0 0.0
    %947 = vmatmul.mubr.f32.gmra.mrb[0].mxu0 %v859
    %v948 = vpop.f32.mrb[0].mxu0
    %v949 = vadd.f32 0.0, %v948
    %v950 = vpop.f32.mrb[0].mxu0
    %951 = vmatprep.mubr.f32.mxu0 0.0
    %952 = vmatmul.mubr.f32.gmra.mrb[0].mxu0 %v862
    %v953 = vpop.f32.mrb[0].mxu0
    %v954 = vadd.f32 0.0, %v953
    %v955 = vpop.f32.mrb[0].mxu0
    %956 = vmatprep.mubr.f32.mxu0 0.0
    %957 = vmatmul.mubr.f32.gmra.mrb[0].mxu0 %v865
    %v958 = vpop.f32.mrb[0].mxu0
    %v959 = vadd.f32 0.0, %v958
    %v960 = vpop.f32.mrb[0].mxu0
    %961 = vmatprep.mubr.f32.mxu0 0.0
    %962 = vmatmul.mubr.f32.gmra.mrb[0].mxu0 %v868
    %v963 = vpop.f32.mrb[0].mxu0
    %v964 = vadd.f32 0.0, %v963
    %v965 = vpop.f32.mrb[0].mxu0
    %966 = vmatprep.mubr.f32.mxu0 0.0
    %967 = vmatmul.mubr.f32.gmra.mrb[0].mxu0 %v871
    %v968 = vpop.f32.mrb[0].mxu0
    %v969 = vadd.f32 0.0, %v968
    %v970 = vpop.f32.mrb[0].mxu0
    %971 = vmatprep.mubr.f32.mxu0 0.0
    %972 = vmatmul.mubr.f32.gmra.mrb[0].mxu0 %v874
    %v973 = vpop.f32.mrb[0].mxu0
    %v974 = vadd.f32 0.0, %v973
    %v975 = vpop.f32.mrb[0].mxu0
    %976 = vmatprep.mubr.f32.mxu0 0.0
    %977 = vmatmul.mubr.f32.gmra.mrb[0].mxu0 %v877
    %v978 = vpop.f32.mrb[0].mxu0
    %v979 = vadd.f32 0.0, %v978
    %v980 = vpop.f32.mrb[0].mxu0
    %981 = vmatprep.mubr.f32.mxu0 0.0
    %982 = vmatmul.mubr.f32.gmra.mrb[0].mxu0 %v880
    %v983 = vpop.f32.mrb[0].mxu0
    %v984 = vadd.f32 0.0, %v983
    %v985 = vpop.f32.mrb[0].mxu0
    %986 = vdwg.mxu0
    %v988 = vsel %vm681, %v843, 0
    %v991 = vsel %vm681, %v845, 0
    %v994 = vsel %vm681, %v847, 0
    %v997 = vsel %vm681, %v849, 0
    %v1000 = vsel %vm681, %v851, 0
    %v1003 = vsel %vm681, %v853, 0
    %v1006 = vsel %vm681, %v855, 0
    %v1009 = vsel %vm681, %v857, 0
    %1011 = vmatprep.subr.mxu0 0.0
    %1012 = vmatpush1.msra.mxu0 %v306
    %1013 = vmatprep.subr.mxu0 0.0
    %1014 = vmatpush1.msra.mxu0 0.0
    %1015 = vmatprep.subr.mxu0 0.0
    %1016 = vmatpush1.msra.mxu0 0.0
    %1017 = vmatprep.subr.mxu0 0.0
    %1018 = vmatpush1.msra.mxu0 0.0
    %1019 = vmatprep.subr.mxu0 0.0
    %1020 = vmatpush1.msra.mxu0 0.0
    %1021 = vmatprep.subr.mxu0 0.0
    %1022 = vmatpush1.msra.mxu0 0.0
    %1023 = vmatprep.subr.mxu0 0.0
    %1024 = vmatpush1.msra.mxu0 0.0
    %1025 = vmatprep.subr.mxu0 0.0
    %1026 = vmatpush1.msra.mxu0 0.0
    %1027 = vmatprep.subr.mxu0 0.0
    %1028 = vmatpush1.msra.mxu0 0.0
    %1029 = vmatprep.subr.mxu0 0.0
    %1030 = vmatpush1.msra.mxu0 0.0
    %1031 = vmatprep.subr.mxu0 0.0
    %1032 = vmatpush1.msra.mxu0 0.0
    %1033 = vmatprep.subr.mxu0 0.0
    %1034 = vmatpush1.msra.mxu0 0.0
    %1035 = vmatprep.subr.mxu0 0.0
    %1036 = vmatpush1.msra.mxu0 0.0
    %1037 = vmatprep.subr.mxu0 0.0
    %1038 = vmatpush1.msra.mxu0 0.0
    %1039 = vmatprep.subr.mxu0 0.0
    %1040 = vmatpush1.msra.mxu0 0.0
    %1041 = vmatprep.subr.mxu0 0.0
    %1042 = vmatpush1.msra.mxu0 0.0
    %1043 = vmatprep.subr.mxu0 0.0
    %1044 = vmatpush1.msra.mxu0 0.0
    %1045 = vmatprep.subr.mxu0 0.0
    %1046 = vmatpush1.msra.mxu0 0.0
    %1047 = vmatprep.subr.mxu0 0.0
    %1048 = vmatpush1.msra.mxu0 0.0
    %1049 = vmatprep.subr.mxu0 0.0
    %1050 = vmatpush1.msra.mxu0 0.0
    %1051 = vmatprep.subr.mxu0 0.0
    %1052 = vmatpush1.msra.mxu0 0.0
    %1053 = vmatprep.subr.mxu0 0.0
    %1054 = vmatpush1.msra.mxu0 0.0
    %1055 = vmatprep.subr.mxu0 0.0
    %1056 = vmatpush1.msra.mxu0 0.0
    %1057 = vmatprep.subr.mxu0 0.0
    %1058 = vmatpush1.msra.mxu0 0.0
    %1059 = vmatprep.subr.mxu0 0.0
    %1060 = vmatpush1.msra.mxu0 0.0
    %1061 = vmatprep.subr.mxu0 0.0
    %1062 = vmatpush1.msra.mxu0 0.0
    %1063 = vmatprep.subr.mxu0 0.0
    %1064 = vmatpush1.msra.mxu0 0.0
    %1065 = vmatprep.subr.mxu0 0.0
    %1066 = vmatpush1.msra.mxu0 0.0
    %1067 = vmatprep.subr.mxu0 0.0
    %1068 = vmatpush1.msra.mxu0 0.0
    %1069 = vmatprep.subr.mxu0 0.0
    %1070 = vmatpush1.msra.mxu0 0.0
    %1071 = vmatprep.subr.mxu0 0.0
    %1072 = vmatpush1.msra.mxu0 0.0
    %1073 = vmatprep.subr.mxu0 0.0
    %1074 = vmatpush1.msra.mxu0 0.0
    %1075 = vmatprep.mubr.f32.mxu0 0.0
    %1076 = vmatmul.mubr.f32.gmra.mrb[0].mxu0 %v988
    %v1077 = vpop.f32.mrb[0].mxu0
    %v1078 = vadd.f32 0.0, %v1077
    %v1079 = vpop.f32.mrb[0].mxu0
    %1080 = vmatprep.mubr.f32.mxu0 0.0
    %1081 = vmatmul.mubr.f32.gmra.mrb[0].mxu0 %v991
    %v1082 = vpop.f32.mrb[0].mxu0
    %v1083 = vadd.f32 0.0, %v1082
    %v1084 = vpop.f32.mrb[0].mxu0
    %1085 = vmatprep.mubr.f32.mxu0 0.0
    %1086 = vmatmul.mubr.f32.gmra.mrb[0].mxu0 %v994
    %v1087 = vpop.f32.mrb[0].mxu0
    %v1088 = vadd.f32 0.0, %v1087
    %v1089 = vpop.f32.mrb[0].mxu0
    %1090 = vmatprep.mubr.f32.mxu0 0.0
    %1091 = vmatmul.mubr.f32.gmra.mrb[0].mxu0 %v997
    %v1092 = vpop.f32.mrb[0].mxu0
    %v1093 = vadd.f32 0.0, %v1092
    %v1094 = vpop.f32.mrb[0].mxu0
    %1095 = vmatprep.mubr.f32.mxu0 0.0
    %1096 = vmatmul.mubr.f32.gmra.mrb[0].mxu0 %v1000
    %v1097 = vpop.f32.mrb[0].mxu0
    %v1098 = vadd.f32 0.0, %v1097
    %v1099 = vpop.f32.mrb[0].mxu0
    %1100 = vmatprep.mubr.f32.mxu0 0.0
    %1101 = vmatmul.mubr.f32.gmra.mrb[0].mxu0 %v1003
    %v1102 = vpop.f32.mrb[0].mxu0
    %v1103 = vadd.f32 0.0, %v1102
    %v1104 = vpop.f32.mrb[0].mxu0
    %1105 = vmatprep.mubr.f32.mxu0 0.0
    %1106 = vmatmul.mubr.f32.gmra.mrb[0].mxu0 %v1006
    %v1107 = vpop.f32.mrb[0].mxu0
    %v1108 = vadd.f32 0.0, %v1107
    %v1109 = vpop.f32.mrb[0].mxu0
    %1110 = vmatprep.mubr.f32.mxu0 0.0
    %1111 = vmatmul.mubr.f32.gmra.mrb[0].mxu0 %v1009
    %v1112 = vpop.f32.mrb[0].mxu0
    %v1113 = vadd.f32 0.0, %v1112
    %v1114 = vpop.f32.mrb[0].mxu0
    %1115 = vdwg.mxu0
    %v1117 = vcombine.high %v310, %v310
    %v1119 = vunpack.c.l.s4 1966171168
    %v1120 = vunpack.c.0.s8 %v1119
    %v1121 = vlaneseq
    %v1122 = vshrl.u32 %v1121, 7
    %v1123 = vsub.s32 %v1120, %v1122
    %v1124 = vrot.slane %v310, %v1123
    %v1126 = vunpack.c.l.s4 1966171168
    %v1127 = vunpack.c.0.s8 %v1126
    %v1128 = vlaneseq
    %v1129 = vshrl.u32 %v1128, 7
    %v1130 = vsub.s32 %v1127, %v1129
    %v1131 = vrot.slane %v1117, %v1130
    %v1132 = vcombine.high %v1124, %v1124
    %v1133 = vcombine.high %v1131, %v1131
    %v1135 = vunpack.c.l.s4 1966171168
    %v1136 = vunpack.c.0.s8 %v1135
    %v1137 = vlaneseq
    %v1138 = vshrl.u32 %v1137, 7
    %v1139 = vsub.s32 %v1136, %v1138
    %v1140 = vrot.slane %v1124, %v1139
    %v1142 = vunpack.c.l.s4 1966171168
    %v1143 = vunpack.c.0.s8 %v1142
    %v1144 = vlaneseq
    %v1145 = vshrl.u32 %v1144, 7
    %v1146 = vsub.s32 %v1143, %v1145
    %v1147 = vrot.slane %v1131, %v1146
    %v1149 = vunpack.c.l.s4 1966171168
    %v1150 = vunpack.c.0.s8 %v1149
    %v1151 = vlaneseq
    %v1152 = vshrl.u32 %v1151, 7
    %v1153 = vsub.s32 %v1150, %v1152
    %v1154 = vrot.slane %v1132, %v1153
    %v1156 = vunpack.c.l.s4 1966171168
    %v1157 = vunpack.c.0.s8 %v1156
    %v1158 = vlaneseq
    %v1159 = vshrl.u32 %v1158, 7
    %v1160 = vsub.s32 %v1157, %v1159
    %v1161 = vrot.slane %v1133, %v1160
    %v1162 = vcombine.high %v1140, %v1140
    %v1163 = vcombine.high %v1147, %v1147
    %v1164 = vcombine.high %v1154, %v1154
    %v1165 = vcombine.high %v1161, %v1161
    %v1166 = vlaneseq
    %v1167 = vshrl.u32 %v1166, 7
    %v1168 = vsub.s32 0, %v1167
    %v1169 = vrot.slane %v1140, %v1168
    %v1170 = vlaneseq
    %v1171 = vshrl.u32 %v1170, 7
    %v1172 = vsub.s32 0, %v1171
    %v1173 = vrot.slane %v1154, %v1172
    %v1174 = vlaneseq
    %v1175 = vshrl.u32 %v1174, 7
    %v1176 = vsub.s32 0, %v1175
    %v1177 = vrot.slane %v1162, %v1176
    %v1178 = vlaneseq
    %v1179 = vshrl.u32 %v1178, 7
    %v1180 = vsub.s32 0, %v1179
    %v1181 = vrot.slane %v1164, %v1180
    %v1182 = vlaneseq
    %v1183 = vshrl.u32 %v1182, 7
    %v1184 = vsub.s32 0, %v1183
    %v1185 = vrot.slane %v1147, %v1184
    %v1186 = vlaneseq
    %v1187 = vshrl.u32 %v1186, 7
    %v1188 = vsub.s32 0, %v1187
    %v1189 = vrot.slane %v1161, %v1188
    %v1190 = vlaneseq
    %v1191 = vshrl.u32 %v1190, 7
    %v1192 = vsub.s32 0, %v1191
    %v1193 = vrot.slane %v1163, %v1192
    %v1194 = vlaneseq
    %v1195 = vshrl.u32 %v1194, 7
    %v1196 = vsub.s32 0, %v1195
    %v1197 = vrot.slane %v1165, %v1196
    %v1206 = vmul.f32 %v949, %v1169
    %v1207 = vmul.f32 %v954, %v1173
    %v1208 = vmul.f32 %v959, %v1177
    %v1209 = vmul.f32 %v964, %v1181
    %v1210 = vmul.f32 %v969, %v1185
    %v1211 = vmul.f32 %v974, %v1189
    %v1212 = vmul.f32 %v979, %v1193
    %v1213 = vmul.f32 %v984, %v1197
    %v1214 = vmul.f32 %v1078, %v1169
    %v1215 = vmul.f32 %v1083, %v1173
    %v1216 = vmul.f32 %v1088, %v1177
    %v1217 = vmul.f32 %v1093, %v1181
    %v1218 = vmul.f32 %v1098, %v1185
    %v1219 = vmul.f32 %v1103, %v1189
    %v1220 = vmul.f32 %v1108, %v1193
    %v1221 = vmul.f32 %v1113, %v1197
    %v1222 = vsel %vm77, %v1206, 0.0
    %v1223 = vsel %vm77, %v1207, 0.0
    %v1224 = vadd.f32 %v1222, %v1223
    %v1225 = vsel %vm77, %v1208, 0.0
    %v1226 = vadd.f32 %v1224, %v1225
    %v1227 = vsel %vm77, %v1209, 0.0
    %v1228 = vadd.f32 %v1226, %v1227
    %v1229 = vsel %vm77, %v1210, 0.0
    %v1230 = vadd.f32 %v1228, %v1229
    %v1231 = vsel %vm77, %v1211, 0.0
    %v1232 = vadd.f32 %v1230, %v1231
    %v1233 = vsel %vm77, %v1212, 0.0
    %v1234 = vadd.f32 %v1232, %v1233
    %v1235 = vsel %vm77, %v1213, 0.0
    %v1236 = vadd.f32 %v1234, %v1235
    %v1237 = vsel %vm77, %v1214, 0.0
    %v1238 = vsel %vm77, %v1215, 0.0
    %v1239 = vadd.f32 %v1237, %v1238
    %v1240 = vsel %vm77, %v1216, 0.0
    %v1241 = vadd.f32 %v1239, %v1240
    %v1242 = vsel %vm77, %v1217, 0.0
    %v1243 = vadd.f32 %v1241, %v1242
    %v1244 = vsel %vm77, %v1218, 0.0
    %v1245 = vadd.f32 %v1243, %v1244
    %v1246 = vsel %vm77, %v1219, 0.0
    %v1247 = vadd.f32 %v1245, %v1246
    %v1248 = vsel %vm77, %v1220, 0.0
    %v1249 = vadd.f32 %v1247, %v1248
    %v1250 = vsel %vm77, %v1221, 0.0
    %v1251 = vadd.f32 %v1249, %v1250
    %v1252 = vld [vmem:[#allocation7] sm:$0x1]
    %v1253 = vld [vmem:[#allocation7 + $0x1] sm:$0x1]
    %v1254 = vld [vmem:[#allocation7 + $0x2] sm:$0x1]
    %v1255 = vld [vmem:[#allocation7 + $0x3] sm:$0x1]
    %v1256 = vld [vmem:[#allocation7 + $0x4] sm:$0x1]
    %v1257 = vadd.f32 %v151, %v1236
    %v1258 = vadd.f32 %v156, %v1251
    %v1259 = vsel %vm77, %v1257, 0.0
    %1260 = vadd.xlane.f32.xlu0 %v1259
    %v1261 = vpop.xlane.xlu0 %1260
    %v1262 = vsel %vm77, %v1258, 0.0
    %1263 = vadd.xlane.f32.xlu0 %v1262
    %v1264 = vpop.xlane.xlu0 %1263
    %v1265 = vrcp.pop 32.0
    %v1266 = vmul.f32 %v1261, %v1265
    %v1267 = vmul.f32 %v1264, %v1265
    %v1268 = vsub.f32 %v1257, %v1266
    %v1269 = vsub.f32 %v1258, %v1267
    %v1270 = vmul.f32 %v1268, %v1268
    %v1271 = vmul.f32 %v1269, %v1269
    %v1272 = vsel %vm77, %v1270, 0.0
    %1273 = vadd.xlane.f32.xlu0 %v1272
    %v1274 = vpop.xlane.xlu0 %1273
    %v1275 = vsel %vm77, %v1271, 0.0
    %1276 = vadd.xlane.f32.xlu0 %v1275
    %v1277 = vpop.xlane.xlu0 %1276
    %v1278 = vmul.f32 %v1274, %v1265
    %v1279 = vmul.f32 %v1277, %v1265
    %v1280 = vadd.f32 %v1278, 1e-05
    %v1281 = vadd.f32 %v1279, 1e-05
    %v1282 = vrsqrt.pop %v1280
    %v1283 = vrsqrt.pop %v1281
    %v1284 = vmul.f32 %v1268, %v1282
    %v1285 = vmul.f32 %v1269, %v1283
    %v1286 = vlaneseq
    %v1287 = vshrl.u32 %v1286, 7
    %v1288 = vsub.s32 0, %v1287
    %v1289 = vrot.slane %v1253, %v1288
    %v1290 = vmul.f32 %v1284, %v1289
    %v1291 = vmul.f32 %v1285, %v1289
    %v1292 = vlaneseq
    %v1293 = vshrl.u32 %v1292, 7
    %v1294 = vsub.s32 0, %v1293
    %v1295 = vrot.slane %v1254, %v1294
    %v1296 = vadd.f32 %v1290, %v1295
    %v1297 = vadd.f32 %v1291, %v1295
    %v1298 = vlaneseq
    %v1299 = vshrl.u32 %v1298, 7
    %v1300 = vsub.s32 0, %v1299
    %v1301 = vrot.slane %v1252, %v1300
    %v1303 = vsel %vm77, %v1296, 0
    %v1306 = vsel %vm77, %v1297, 0
    %1308 = vmatprep.subr.mxu0 0.0
    %1309 = vmatpush1.msra.mxu0 %v73
    %1310 = vmatprep.subr.mxu0 0.0
    %1311 = vmatpush1.msra.mxu0 %v74
    %1312 = vmatprep.subr.mxu0 0.0
    %1313 = vmatpush1.msra.mxu0 %v75
    %1314 = vmatprep.subr.mxu0 0.0
    %1315 = vmatpush1.msra.mxu0 %v76
    %1316 = vmatprep.subr.mxu0 0.0
    %1317 = vmatpush1.msra.mxu0 0.0
    %1318 = vmatprep.subr.mxu0 0.0
    %1319 = vmatpush1.msra.mxu0 0.0
    %1320 = vmatprep.subr.mxu0 0.0
    %1321 = vmatpush1.msra.mxu0 0.0
    %1322 = vmatprep.subr.mxu0 0.0
    %1323 = vmatpush1.msra.mxu0 0.0
    %1324 = vmatprep.subr.mxu0 0.0
    %1325 = vmatpush1.msra.mxu0 0.0
    %1326 = vmatprep.subr.mxu0 0.0
    %1327 = vmatpush1.msra.mxu0 0.0
    %1328 = vmatprep.subr.mxu0 0.0
    %1329 = vmatpush1.msra.mxu0 0.0
    %1330 = vmatprep.subr.mxu0 0.0
    %1331 = vmatpush1.msra.mxu0 0.0
    %1332 = vmatprep.subr.mxu0 0.0
    %1333 = vmatpush1.msra.mxu0 0.0
    %1334 = vmatprep.subr.mxu0 0.0
    %1335 = vmatpush1.msra.mxu0 0.0
    %1336 = vmatprep.subr.mxu0 0.0
    %1337 = vmatpush1.msra.mxu0 0.0
    %1338 = vmatprep.subr.mxu0 0.0
    %1339 = vmatpush1.msra.mxu0 0.0
    %1340 = vmatprep.subr.mxu0 0.0
    %1341 = vmatpush1.msra.mxu0 0.0
    %1342 = vmatprep.subr.mxu0 0.0
    %1343 = vmatpush1.msra.mxu0 0.0
    %1344 = vmatprep.subr.mxu0 0.0
    %1345 = vmatpush1.msra.mxu0 0.0
    %1346 = vmatprep.subr.mxu0 0.0
    %1347 = vmatpush1.msra.mxu0 0.0
    %1348 = vmatprep.subr.mxu0 0.0
    %1349 = vmatpush1.msra.mxu0 0.0
    %1350 = vmatprep.subr.mxu0 0.0
    %1351 = vmatpush1.msra.mxu0 0.0
    %1352 = vmatprep.subr.mxu0 0.0
    %1353 = vmatpush1.msra.mxu0 0.0
    %1354 = vmatprep.subr.mxu0 0.0
    %1355 = vmatpush1.msra.mxu0 0.0
    %1356 = vmatprep.subr.mxu0 0.0
    %1357 = vmatpush1.msra.mxu0 0.0
    %1358 = vmatprep.subr.mxu0 0.0
    %1359 = vmatpush1.msra.mxu0 0.0
    %1360 = vmatprep.subr.mxu0 0.0
    %1361 = vmatpush1.msra.mxu0 0.0
    %1362 = vmatprep.subr.mxu0 0.0
    %1363 = vmatpush1.msra.mxu0 0.0
    %1364 = vmatprep.subr.mxu0 0.0
    %1365 = vmatpush1.msra.mxu0 0.0
    %1366 = vmatprep.subr.mxu0 0.0
    %1367 = vmatpush1.msra.mxu0 0.0
    %1368 = vmatprep.subr.mxu0 0.0
    %1369 = vmatpush1.msra.mxu0 0.0
    %1370 = vmatprep.subr.mxu0 0.0
    %1371 = vmatpush1.msra.mxu0 0.0
    %1372 = vmatprep.mubr.f32.mxu0 0.0
    %1373 = vmatmul.mubr.f32.gmra.mrb[0].mxu0 %v1303
    %v1374 = vpop.f32.mrb[0].mxu0
    %v1375 = vadd.f32 %v1301, %v1374
    %v1376 = vpop.f32.mrb[0].mxu0
    %1377 = vmatprep.mubr.f32.mxu0 0.0
    %1378 = vmatmul.mubr.f32.gmra.mrb[0].mxu0 %v1306
    %v1379 = vpop.f32.mrb[0].mxu0
    %v1380 = vadd.f32 %v1301, %v1379
    %v1381 = vpop.f32.mrb[0].mxu0
    %1382 = vdwg.mxu0
    %v1383 = vmax.f32 %v1375, 0.0
    %v1384 = vmax.f32 %v1380, 0.0
    %v1385 = vadd.f32 %v1296, %v1383
    %v1386 = vadd.f32 %v1297, %v1384
    %v1387 = vsel %vm77, %v1385, 0.0
    %1388 = vadd.xlane.f32.xlu0 %v1387
    %v1389 = vpop.xlane.xlu0 %1388
    %v1390 = vsel %vm77, %v1386, 0.0
    %1391 = vadd.xlane.f32.xlu0 %v1390
    %v1392 = vpop.xlane.xlu0 %1391
    %v1393 = vmul.f32 %v1389, %v1265
    %v1394 = vmul.f32 %v1392, %v1265
    %v1395 = vsub.f32 %v1385, %v1393
    %v1396 = vsub.f32 %v1386, %v1394
    %v1397 = vmul.f32 %v1395, %v1395
    %v1398 = vmul.f32 %v1396, %v1396
    %v1399 = vsel %vm77, %v1397, 0.0
    %1400 = vadd.xlane.f32.xlu0 %v1399
    %v1401 = vpop.xlane.xlu0 %1400
    %v1402 = vsel %vm77, %v1398, 0.0
    %1403 = vadd.xlane.f32.xlu0 %v1402
    %v1404 = vpop.xlane.xlu0 %1403
    %v1405 = vmul.f32 %v1401, %v1265
    %v1406 = vmul.f32 %v1404, %v1265
    %v1407 = vadd.f32 %v1405, 1e-05
    %v1408 = vadd.f32 %v1406, 1e-05
    %v1409 = vrsqrt.pop %v1407
    %v1410 = vrsqrt.pop %v1408
    %v1411 = vmul.f32 %v1395, %v1409
    %v1412 = vmul.f32 %v1396, %v1410
    %v1413 = vlaneseq
    %v1414 = vshrl.u32 %v1413, 7
    %v1415 = vsub.s32 0, %v1414
    %v1416 = vrot.slane %v1255, %v1415
    %v1417 = vmul.f32 %v1411, %v1416
    %v1418 = vmul.f32 %v1412, %v1416
    %v1419 = vlaneseq
    %v1420 = vshrl.u32 %v1419, 7
    %v1421 = vsub.s32 0, %v1420
    %v1422 = vrot.slane %v1256, %v1421
    %v1423 = vadd.f32 %v1417, %v1422
    %v1424 = vadd.f32 %v1418, %v1422
    %1425 = vst.msk [vmem:[#allocation8] sm:$0xff] %vm77, %v1423
    %1426 = vst.msk [vmem:[#allocation8 + $0x8] sm:$0xff] %vm77, %v1424
    // Predicated region
    $region26: #{tpu_custom_call.1} parent=1 // pred_check
      _
    $region27: #{tpu_custom_call.1} parent=1 // pred_check_branch
      %1428 = sbr.rel (0) target = $region29
    $region28: #{tpu_custom_call.1} parent=1 // pred_region
      %s1430 = ssub.s32 256, 256
      %1431 = vsyncadd [#allocation4], %s1430
      %s1432 = sshll.u32 [#allocation8], 4
      %s1433 = int_to_ptr.vmem [resolvable:$true] %s1432
      %1438 = dma.vmem_to_hbm [thread:$0]  %s1433, 256, %s3, [#allocation4], 128, 128, 8
    $region29: #{tpu_custom_call.1} parent=1 // pred_fallthru
      _
    // Predicated region
    $region30: #{tpu_custom_call.1} parent=1 // pred_check
      _
    $region31: #{tpu_custom_call.1} parent=1 // pred_check_branch
      %1440 = sbr.rel (0) target = $region33
    $region32: #{tpu_custom_call.1} parent=1 // pred_region
      %1441 = dma.done [#allocation4], 256
    $region33: #{tpu_custom_call.1} parent=1 // pred_fallthru
      _
    %1442 = vsyncpa [#allocation3], 1
    %1443 = vsyncpa [#allocation6], 1
    %1444 = vsyncpa [#allocation4], 1

</llo_original>
